<compile_context>
chip_gen: v7x
topology: tpu7x:2x2x1
jax: 0.10.0
libtpu: 0.0.40
codegen_flags: <defaults>
</compile_context>

<pallas_src>
import jax
import jax.numpy as jnp
from jax.experimental import pallas as pl
from jax.experimental.pallas import tpu as pltpu

LANE = 128  # TPU lane width


def _round_up(n, m):
    return ((n + m - 1) // m) * m


def _pad_axis(a, axis, target):
    """Zero-pad `a` along `axis` up to size `target`."""
    pad = target - a.shape[axis]
    if pad <= 0:
        return a
    widths = [(0, 0)] * a.ndim
    widths[axis] = (0, pad)
    return jnp.pad(a, widths)


# ----------------------------------------------------------------------------
# Kernel
# ----------------------------------------------------------------------------
def ae_linear_kernel(x_ref,
                     w1_ref, b1_ref,
                     w2_ref, b2_ref,
                     w3_ref, b3_ref,
                     w4_ref, b4_ref,
                     o_ref):
    # x and weights arrive as bf16; MXU accumulates in fp32, bias-add/ReLU run
    # in fp32 on the VPU, activations re-cast to bf16 between layers.
    x = x_ref[...]

    # encoder_hidden_layer + relu
    h = jnp.dot(x, w1_ref[...], preferred_element_type=jnp.float32)
    h = jnp.maximum(h + b1_ref[...], 0.0).astype(jnp.bfloat16)

    # encoder_output_layer + relu  -> code (lane-padded to 128)
    c = jnp.dot(h, w2_ref[...], preferred_element_type=jnp.float32)
    c = jnp.maximum(c + b2_ref[...], 0.0).astype(jnp.bfloat16)

    # decoder_hidden_layer + relu
    d = jnp.dot(c, w3_ref[...], preferred_element_type=jnp.float32)
    d = jnp.maximum(d + b3_ref[...], 0.0).astype(jnp.bfloat16)

    # decoder_output_layer + relu -> reconstruction (fp32 output)
    r = jnp.dot(d, w4_ref[...], preferred_element_type=jnp.float32)
    o_ref[...] = jnp.maximum(r + b4_ref[...], 0.0).astype(o_ref.dtype)


# ----------------------------------------------------------------------------
# One-time parameter preparation (hoisted out of the forward path)
# ----------------------------------------------------------------------------
def prepare_params(params):
    """Pad every feature dim to a multiple of 128 (exact: zero rows/cols) and
    cast weights to bf16.  Run once; reuse the result for every forward call."""
    w1, b1 = params["w1"], params["b1"]
    w2, b2 = params["w2"], params["b2"]
    w3, b3 = params["w3"], params["b3"]
    w4, b4 = params["w4"], params["b4"]

    F = w1.shape[0]
    Fp = _round_up(F, LANE)
    H1p = _round_up(w1.shape[1], LANE)          # 256
    Cp = _round_up(w2.shape[1], LANE)           # 64 -> 128 bottleneck (exact)
    H2p = _round_up(w3.shape[1], LANE)          # 256

    return {
        "F": F, "Fp": Fp, "H1p": H1p, "Cp": Cp, "H2p": H2p,
        "w1": _pad_axis(_pad_axis(w1, 0, Fp), 1, H1p).astype(jnp.bfloat16),
        "b1": _pad_axis(b1, 1, H1p),
        "w2": _pad_axis(_pad_axis(w2, 0, H1p), 1, Cp).astype(jnp.bfloat16),
        "b2": _pad_axis(b2, 1, Cp),
        "w3": _pad_axis(_pad_axis(w3, 0, Cp), 1, H2p).astype(jnp.bfloat16),
        "b3": _pad_axis(b3, 1, H2p),
        "w4": _pad_axis(_pad_axis(w4, 0, H2p), 1, Fp).astype(jnp.bfloat16),
        "b4": _pad_axis(b4, 1, Fp),
    }


# ----------------------------------------------------------------------------
# Batch-tile selection
# ----------------------------------------------------------------------------
def _choose_tm(B, Fp, tm_max=512):
    """Batch tile: multiple of 16 (bf16 sublane packing), minimal padding
    waste, >=2 grid steps when B >= 256 (keep both v7x TCs busy), and
    double-buffered x/out tiles kept well under the v5e scoped-VMEM limit."""
    def tile_bytes(t):
        # double-buffered bf16 x tile + double-buffered fp32 out tile
        return 2 * t * Fp * 2 + 2 * t * Fp * 4

    vmem_tile_budget = 12 * 1024 * 1024

    if B <= 16:
        return 16

    cands = [t for t in (512, 256, 128, 64, 32, 16)
             if t <= tm_max and tile_bytes(t) <= vmem_tile_budget]
    if not cands:
        cands = [16]

    best = None
    for t in cands:
        Bp = _round_up(B, t)
        if B >= 256 and Bp // t < 2:
            continue  # need >=2 grid steps so both v7x TensorCores get work
        key = (Bp / B, -t)  # minimize padding waste, then prefer larger tiles
        if best is None or key < best[0]:
            best = (key, t)
    return best[1] if best is not None else cands[-1]


# ----------------------------------------------------------------------------
# Forward
# ----------------------------------------------------------------------------
def ae_linear_forward(x, prepped, *, tm_max=512):
    """x: (B, input_shape) float32.  prepped: output of prepare_params()."""
    B, F = x.shape
    assert F == prepped["F"], "input feature dim does not match prepared params"
    Fp, H1p, Cp, H2p = prepped["Fp"], prepped["H1p"], prepped["Cp"], prepped["H2p"]

    # Pad feature dim to 128 lanes and cast to bf16 in one host-side op
    # (identical MXU operand bits to an in-kernel cast, half the HBM traffic).
    xp = _pad_axis(x, 1, Fp).astype(jnp.bfloat16)

    tm = _choose_tm(B, Fp, tm_max=tm_max)
    Bp = _round_up(B, tm)
    xp = _pad_axis(xp, 0, Bp)
    grid = (Bp // tm,)

    flops = 2 * Bp * (Fp * H1p + H1p * Cp + Cp * H2p + H2p * Fp)
    bytes_accessed = (
        Bp * Fp * 2                                                  # x (bf16)
        + Bp * Fp * 4                                                # out (fp32)
        + 2 * sum(prepped[f"w{i}"].size for i in range(1, 5))        # bf16 weights
        + 4 * sum(prepped[f"b{i}"].size for i in range(1, 5))        # fp32 biases
    )
    cost = pl.CostEstimate(flops=int(flops), transcendentals=0,
                           bytes_accessed=int(bytes_accessed))

    # VMEM estimate: resident constants (counted double-buffered to be safe)
    # plus double-buffered x/out tiles.  Only pass an explicit limit if the
    # default scoped limit would be exceeded (keeps small-F compiles untouched).
    const_bytes = sum(prepped[f"w{i}"].size * 2 + prepped[f"b{i}"].size * 4
                      for i in range(1, 5))
    vmem_estimate = 2 * const_bytes + 2 * tm * Fp * 2 + 2 * tm * Fp * 4
    cp_kwargs = dict(dimension_semantics=("parallel",))
    if vmem_estimate > 14 * 1024 * 1024:
        cp_kwargs["vmem_limit_bytes"] = min(int(vmem_estimate * 5 // 4),
                                            64 * 1024 * 1024)
    compiler_params = pltpu.CompilerParams(**cp_kwargs)

    def run(const_pipeline_mode):
        if const_pipeline_mode is None:
            def const_spec(shape):
                return pl.BlockSpec(shape, lambda i: (0, 0))
        else:
            def const_spec(shape):
                return pl.BlockSpec(shape, lambda i: (0, 0),
                                    pipeline_mode=const_pipeline_mode)

        return pl.pallas_call(
            ae_linear_kernel,
            out_shape=jax.ShapeDtypeStruct((Bp, Fp), jnp.float32),
            grid=grid,
            in_specs=[
                pl.BlockSpec((tm, Fp), lambda i: (i, 0)),
                const_spec(prepped["w1"].shape), const_spec(prepped["b1"].shape),
                const_spec(prepped["w2"].shape), const_spec(prepped["b2"].shape),
                const_spec(prepped["w3"].shape), const_spec(prepped["b3"].shape),
                const_spec(prepped["w4"].shape), const_spec(prepped["b4"].shape),
            ],
            out_specs=pl.BlockSpec((tm, Fp), lambda i: (i, 0)),
            compiler_params=compiler_params,
            cost_estimate=cost,
        )(xp, prepped["w1"], prepped["b1"], prepped["w2"], prepped["b2"],
          prepped["w3"], prepped["b3"], prepped["w4"], prepped["b4"])

    try:
        # Grid-invariant constants: request single-buffering to halve their
        # VMEM footprint (matters most on v7x's 64 MiB VMEM).
        out = run(pl.Buffered(1))
    except Exception:
        # Older jax versions may not accept Buffered(1); default double-buffer.
        out = run(None)

    return out[:B, :F]


# ----------------------------------------------------------------------------
# Params / references / checks
# ----------------------------------------------------------------------------
def init_params(key, input_shape, compression_dim=64, decoder_dims=256):
    """Deterministic init mimicking nn.Linear default (uniform +/- 1/sqrt(fan_in)).
    Weights stored as (in, out) = transpose of PyTorch's (out, in)."""
    dims = [
        (input_shape, 256),                # encoder_hidden_layer
        (256, compression_dim),            # encoder_output_layer
        (compression_dim, decoder_dims),   # decoder_hidden_layer
        (decoder_dims, input_shape),       # decoder_output_layer
    ]
    params = {}
    keys = jax.random.split(key, 2 * len(dims))
    for i, (fan_in, fan_out) in enumerate(dims):
        bound = 1.0 / (fan_in ** 0.5)
        w = jax.random.uniform(keys[2 * i], (fan_in, fan_out),
                               minval=-bound, maxval=bound, dtype=jnp.float32)
        b = jax.random.uniform(keys[2 * i + 1], (1, fan_out),
                               minval=-bound, maxval=bound, dtype=jnp.float32)
        params[f"w{i+1}"] = w
        params[f"b{i+1}"] = b
    return params


def ae_linear_reference_f32(x, p):
    """Pure-fp32 JAX reference (loose check)."""
    relu = lambda t: jnp.maximum(t, 0.0)
    h = relu(x @ p["w1"] + p["b1"])
    c = relu(h @ p["w2"] + p["b2"])
    d = relu(c @ p["w3"] + p["b3"])
    return relu(d @ p["w4"] + p["b4"])


def ae_linear_reference_bf16(x, p):
    """Reference mirroring the kernel's numerics: bf16 matmul operands, fp32 accum."""
    relu = lambda t: jnp.maximum(t, 0.0)
    dot = lambda a, w: jnp.dot(a.astype(jnp.bfloat16), w.astype(jnp.bfloat16),
                               preferred_element_type=jnp.float32)
    h = relu(dot(x, p["w1"]) + p["b1"])
    c = relu(dot(h, p["w2"]) + p["b2"])
    d = relu(dot(c, p["w3"]) + p["b3"])
    return relu(dot(d, p["w4"]) + p["b4"])


def _check(x, raw_params):
    prepped = prepare_params(raw_params)          # one-time prep, reused per call
    out = jax.block_until_ready(ae_linear_forward(x, prepped))
    assert out.shape == x.shape
    assert out.dtype == jnp.float32
    ref_bf16 = ae_linear_reference_bf16(x, raw_params)
    ref_f32 = ae_linear_reference_f32(x, raw_params)
    assert jnp.allclose(out, ref_bf16, atol=1e-2, rtol=1e-2), "mismatch vs bf16 reference"
    assert jnp.allclose(out, ref_f32, atol=6e-2, rtol=6e-2), "mismatch vs fp32 reference"


if __name__ == "__main__":
    key = jax.random.PRNGKey(0)
    k1, k2, k3, k4 = jax.random.split(key, 4)

    # Case 1: small, spec-consistent shapes (B=8, input_shape=128) -> single 16-row tile.
    x_small = jax.random.normal(k1, (8, 128), dtype=jnp.float32)
    p_small = init_params(k2, 128, compression_dim=64, decoder_dims=256)
    _check(x_small, p_small)

    # Case 2: larger batch + non-multiple-of-128 feature dim -> exercises the
    # waste-minimizing tm selection (tm=128, grid=(3,), zero padded rows),
    # the parallel batch grid, and the exact zero-padding path.
    x_big = jax.random.normal(k3, (384, 96), dtype=jnp.float32)
    p_big = init_params(k4, 96, compression_dim=64, decoder_dims=256)
    _check(x_big, p_big)

    print("KERNEL_OK")
</pallas_src>

<mosaic_0001>
module attributes {stable_mosaic.version = 11 : i64} {
  func.func @ae_linear_kernel(%arg0: i32, %arg1: memref<16x128xbf16, #tpu.memory_space<vmem>>, %arg2: memref<128x256xbf16, #tpu.memory_space<vmem>>, %arg3: memref<1x256xf32, #tpu.memory_space<vmem>>, %arg4: memref<256x128xbf16, #tpu.memory_space<vmem>>, %arg5: memref<1x128xf32, #tpu.memory_space<vmem>>, %arg6: memref<128x256xbf16, #tpu.memory_space<vmem>>, %arg7: memref<1x256xf32, #tpu.memory_space<vmem>>, %arg8: memref<256x128xbf16, #tpu.memory_space<vmem>>, %arg9: memref<1x128xf32, #tpu.memory_space<vmem>>, %arg10: memref<16x128xf32, #tpu.memory_space<vmem>>) attributes {dimension_semantics = [#tpu.dimension_semantics<parallel>], iteration_bounds = array<i64: 1>, scalar_prefetch = 0 : i64, scratch_operands = 0 : i64, tpu.core_type = #tpu.core_type<tc>, window_params = [{transform_indices = @transform_0, window_bounds = array<i64: 16, 128>}, {pipeline_mode = #tpu.pipeline_mode<synchronous>, transform_indices = @transform_1, window_bounds = array<i64: 128, 256>}, {pipeline_mode = #tpu.pipeline_mode<synchronous>, transform_indices = @transform_2, window_bounds = array<i64: 1, 256>}, {pipeline_mode = #tpu.pipeline_mode<synchronous>, transform_indices = @transform_3, window_bounds = array<i64: 256, 128>}, {pipeline_mode = #tpu.pipeline_mode<synchronous>, transform_indices = @transform_4, window_bounds = array<i64: 1, 128>}, {pipeline_mode = #tpu.pipeline_mode<synchronous>, transform_indices = @transform_5, window_bounds = array<i64: 128, 256>}, {pipeline_mode = #tpu.pipeline_mode<synchronous>, transform_indices = @transform_6, window_bounds = array<i64: 1, 256>}, {pipeline_mode = #tpu.pipeline_mode<synchronous>, transform_indices = @transform_7, window_bounds = array<i64: 256, 128>}, {pipeline_mode = #tpu.pipeline_mode<synchronous>, transform_indices = @transform_8, window_bounds = array<i64: 1, 128>}, {transform_indices = @transform_9, window_bounds = array<i64: 16, 128>}]} {
    %c0 = arith.constant 0 : index
    %c0_0 = arith.constant 0 : index
    %0 = vector.load %arg1[%c0, %c0_0] : memref<16x128xbf16, #tpu.memory_space<vmem>>, vector<16x128xbf16>
    %c0_1 = arith.constant 0 : index
    %c0_2 = arith.constant 0 : index
    %1 = vector.load %arg2[%c0_1, %c0_2] : memref<128x256xbf16, #tpu.memory_space<vmem>>, vector<128x256xbf16>
    %cst = arith.constant dense<0.000000e+00> : vector<16x256xf32>
    %2 = tpu.matmul %0, %1, %cst {dimension_numbers = #tpu.dot_dimension_numbers<[1], [0], [0], [1], [0, 0, 1, 1], [], []>} : vector<16x128xbf16>, vector<128x256xbf16>, vector<16x256xf32> -> vector<16x256xf32>
    %c0_3 = arith.constant 0 : index
    %c0_4 = arith.constant 0 : index
    %3 = vector.load %arg3[%c0_3, %c0_4] : memref<1x256xf32, #tpu.memory_space<vmem>>, vector<1x256xf32>
    %4 = vector.broadcast %3 : vector<1x256xf32> to vector<16x256xf32>
    %5 = arith.addf %2, %4 : vector<16x256xf32>
    %cst_5 = arith.constant 0.000000e+00 : f32
    %6 = vector.broadcast %cst_5 : f32 to vector<16x256xf32>
    %7 = arith.maximumf %5, %6 : vector<16x256xf32>
    %8 = arith.truncf %7 : vector<16x256xf32> to vector<16x256xbf16>
    %c0_6 = arith.constant 0 : index
    %c0_7 = arith.constant 0 : index
    %9 = vector.load %arg4[%c0_6, %c0_7] : memref<256x128xbf16, #tpu.memory_space<vmem>>, vector<256x128xbf16>
    %cst_8 = arith.constant dense<0.000000e+00> : vector<16x128xf32>
    %10 = tpu.matmul %8, %9, %cst_8 {dimension_numbers = #tpu.dot_dimension_numbers<[1], [0], [0], [1], [0, 0, 1, 1], [], []>} : vector<16x256xbf16>, vector<256x128xbf16>, vector<16x128xf32> -> vector<16x128xf32>
    %c0_9 = arith.constant 0 : index
    %c0_10 = arith.constant 0 : index
    %11 = vector.load %arg5[%c0_9, %c0_10] : memref<1x128xf32, #tpu.memory_space<vmem>>, vector<1x128xf32>
    %12 = vector.broadcast %11 : vector<1x128xf32> to vector<16x128xf32>
    %13 = arith.addf %10, %12 : vector<16x128xf32>
    %cst_11 = arith.constant 0.000000e+00 : f32
    %14 = vector.broadcast %cst_11 : f32 to vector<16x128xf32>
    %15 = arith.maximumf %13, %14 : vector<16x128xf32>
    %16 = arith.truncf %15 : vector<16x128xf32> to vector<16x128xbf16>
    %c0_12 = arith.constant 0 : index
    %c0_13 = arith.constant 0 : index
    %17 = vector.load %arg6[%c0_12, %c0_13] : memref<128x256xbf16, #tpu.memory_space<vmem>>, vector<128x256xbf16>
    %cst_14 = arith.constant dense<0.000000e+00> : vector<16x256xf32>
    %18 = tpu.matmul %16, %17, %cst_14 {dimension_numbers = #tpu.dot_dimension_numbers<[1], [0], [0], [1], [0, 0, 1, 1], [], []>} : vector<16x128xbf16>, vector<128x256xbf16>, vector<16x256xf32> -> vector<16x256xf32>
    %c0_15 = arith.constant 0 : index
    %c0_16 = arith.constant 0 : index
    %19 = vector.load %arg7[%c0_15, %c0_16] : memref<1x256xf32, #tpu.memory_space<vmem>>, vector<1x256xf32>
    %20 = vector.broadcast %19 : vector<1x256xf32> to vector<16x256xf32>
    %21 = arith.addf %18, %20 : vector<16x256xf32>
    %cst_17 = arith.constant 0.000000e+00 : f32
    %22 = vector.broadcast %cst_17 : f32 to vector<16x256xf32>
    %23 = arith.maximumf %21, %22 : vector<16x256xf32>
    %24 = arith.truncf %23 : vector<16x256xf32> to vector<16x256xbf16>
    %c0_18 = arith.constant 0 : index
    %c0_19 = arith.constant 0 : index
    %25 = vector.load %arg8[%c0_18, %c0_19] : memref<256x128xbf16, #tpu.memory_space<vmem>>, vector<256x128xbf16>
    %cst_20 = arith.constant dense<0.000000e+00> : vector<16x128xf32>
    %26 = tpu.matmul %24, %25, %cst_20 {dimension_numbers = #tpu.dot_dimension_numbers<[1], [0], [0], [1], [0, 0, 1, 1], [], []>} : vector<16x256xbf16>, vector<256x128xbf16>, vector<16x128xf32> -> vector<16x128xf32>
    %c0_21 = arith.constant 0 : index
    %c0_22 = arith.constant 0 : index
    %27 = vector.load %arg9[%c0_21, %c0_22] : memref<1x128xf32, #tpu.memory_space<vmem>>, vector<1x128xf32>
    %28 = vector.broadcast %27 : vector<1x128xf32> to vector<16x128xf32>
    %29 = arith.addf %26, %28 : vector<16x128xf32>
    %cst_23 = arith.constant 0.000000e+00 : f32
    %30 = vector.broadcast %cst_23 : f32 to vector<16x128xf32>
    %31 = arith.maximumf %29, %30 : vector<16x128xf32>
    %c0_24 = arith.constant 0 : index
    %c0_25 = arith.constant 0 : index
    %32 = vector.load %arg10[%c0_24, %c0_25] : memref<16x128xf32, #tpu.memory_space<vmem>>, vector<16x128xf32>
    tpu.vector_store %arg10[%c0_24, %c0_25], %31 {strides = array<i32>} : memref<16x128xf32, #tpu.memory_space<vmem>>, vector<16x128xf32>,
    return
  }
  func.func @transform_0(%arg0: i32) -> (i32, i32) {
    %c0_i32 = arith.constant 0 : i32
    %c0_i32_0 = arith.constant 0 : i32
    return %arg0, %c0_i32 : i32, i32
  }
  func.func @transform_1(%arg0: i32) -> (i32, i32) {
    %c0_i32 = arith.constant 0 : i32
    %c0_i32_0 = arith.constant 0 : i32
    %c0_i32_1 = arith.constant 0 : i32
    return %c0_i32, %c0_i32_0 : i32, i32
  }
  func.func @transform_2(%arg0: i32) -> (i32, i32) {
    %c0_i32 = arith.constant 0 : i32
    %c0_i32_0 = arith.constant 0 : i32
    %c0_i32_1 = arith.constant 0 : i32
    return %c0_i32, %c0_i32_0 : i32, i32
  }
  func.func @transform_3(%arg0: i32) -> (i32, i32) {
    %c0_i32 = arith.constant 0 : i32
    %c0_i32_0 = arith.constant 0 : i32
    %c0_i32_1 = arith.constant 0 : i32
    return %c0_i32, %c0_i32_0 : i32, i32
  }
  func.func @transform_4(%arg0: i32) -> (i32, i32) {
    %c0_i32 = arith.constant 0 : i32
    %c0_i32_0 = arith.constant 0 : i32
    %c0_i32_1 = arith.constant 0 : i32
    return %c0_i32, %c0_i32_0 : i32, i32
  }
  func.func @transform_5(%arg0: i32) -> (i32, i32) {
    %c0_i32 = arith.constant 0 : i32
    %c0_i32_0 = arith.constant 0 : i32
    %c0_i32_1 = arith.constant 0 : i32
    return %c0_i32, %c0_i32_0 : i32, i32
  }
  func.func @transform_6(%arg0: i32) -> (i32, i32) {
    %c0_i32 = arith.constant 0 : i32
    %c0_i32_0 = arith.constant 0 : i32
    %c0_i32_1 = arith.constant 0 : i32
    return %c0_i32, %c0_i32_0 : i32, i32
  }
  func.func @transform_7(%arg0: i32) -> (i32, i32) {
    %c0_i32 = arith.constant 0 : i32
    %c0_i32_0 = arith.constant 0 : i32
    %c0_i32_1 = arith.constant 0 : i32
    return %c0_i32, %c0_i32_0 : i32, i32
  }
  func.func @transform_8(%arg0: i32) -> (i32, i32) {
    %c0_i32 = arith.constant 0 : i32
    %c0_i32_0 = arith.constant 0 : i32
    %c0_i32_1 = arith.constant 0 : i32
    return %c0_i32, %c0_i32_0 : i32, i32
  }
  func.func @transform_9(%arg0: i32) -> (i32, i32) {
    %c0_i32 = arith.constant 0 : i32
    %c0_i32_0 = arith.constant 0 : i32
    return %arg0, %c0_i32 : i32, i32
  }
}

module attributes {stable_mosaic.version = 11 : i64} {
  func.func @ae_linear_kernel(%arg0: i32, %arg1: memref<16x128xbf16, #tpu.memory_space<vmem>>, %arg2: memref<128x256xbf16, #tpu.memory_space<vmem>>, %arg3: memref<1x256xf32, #tpu.memory_space<vmem>>, %arg4: memref<256x128xbf16, #tpu.memory_space<vmem>>, %arg5: memref<1x128xf32, #tpu.memory_space<vmem>>, %arg6: memref<128x256xbf16, #tpu.memory_space<vmem>>, %arg7: memref<1x256xf32, #tpu.memory_space<vmem>>, %arg8: memref<256x128xbf16, #tpu.memory_space<vmem>>, %arg9: memref<1x128xf32, #tpu.memory_space<vmem>>, %arg10: memref<16x128xf32, #tpu.memory_space<vmem>>) attributes {dimension_semantics = [#tpu.dimension_semantics<parallel>], iteration_bounds = array<i64: 1>, scalar_prefetch = 0 : i64, scratch_operands = 0 : i64, tpu.core_type = #tpu.core_type<tc>, window_params = [{transform_indices = @transform_0, window_bounds = array<i64: 16, 128>}, {pipeline_mode = #tpu.pipeline_mode<synchronous>, transform_indices = @transform_1, window_bounds = array<i64: 128, 256>}, {pipeline_mode = #tpu.pipeline_mode<synchronous>, transform_indices = @transform_2, window_bounds = array<i64: 1, 256>}, {pipeline_mode = #tpu.pipeline_mode<synchronous>, transform_indices = @transform_3, window_bounds = array<i64: 256, 128>}, {pipeline_mode = #tpu.pipeline_mode<synchronous>, transform_indices = @transform_4, window_bounds = array<i64: 1, 128>}, {pipeline_mode = #tpu.pipeline_mode<synchronous>, transform_indices = @transform_5, window_bounds = array<i64: 128, 256>}, {pipeline_mode = #tpu.pipeline_mode<synchronous>, transform_indices = @transform_6, window_bounds = array<i64: 1, 256>}, {pipeline_mode = #tpu.pipeline_mode<synchronous>, transform_indices = @transform_7, window_bounds = array<i64: 256, 128>}, {pipeline_mode = #tpu.pipeline_mode<synchronous>, transform_indices = @transform_8, window_bounds = array<i64: 1, 128>}, {transform_indices = @transform_9, window_bounds = array<i64: 16, 128>}]} {
    %c0 = arith.constant 0 : index
    %c0_0 = arith.constant 0 : index
    %0 = vector.load %arg1[%c0, %c0_0] : memref<16x128xbf16, #tpu.memory_space<vmem>>, vector<16x128xbf16>
    %c0_1 = arith.constant 0 : index
    %c0_2 = arith.constant 0 : index
    %1 = vector.load %arg2[%c0_1, %c0_2] : memref<128x256xbf16, #tpu.memory_space<vmem>>, vector<128x256xbf16>
    %cst = arith.constant dense<0.000000e+00> : vector<16x256xf32>
    %2 = tpu.matmul %0, %1, %cst {dimension_numbers = #tpu.dot_dimension_numbers<[1], [0], [0], [1], [0, 0, 1, 1], [], []>} : vector<16x128xbf16>, vector<128x256xbf16>, vector<16x256xf32> -> vector<16x256xf32>
    %c0_3 = arith.constant 0 : index
    %c0_4 = arith.constant 0 : index
    %3 = vector.load %arg3[%c0_3, %c0_4] : memref<1x256xf32, #tpu.memory_space<vmem>>, vector<1x256xf32>
    %4 = vector.broadcast %3 : vector<1x256xf32> to vector<16x256xf32>
    %5 = arith.addf %2, %4 : vector<16x256xf32>
    %cst_5 = arith.constant 0.000000e+00 : f32
    %6 = vector.broadcast %cst_5 : f32 to vector<16x256xf32>
    %7 = arith.maximumf %5, %6 : vector<16x256xf32>
    %8 = arith.truncf %7 : vector<16x256xf32> to vector<16x256xbf16>
    %c0_6 = arith.constant 0 : index
    %c0_7 = arith.constant 0 : index
    %9 = vector.load %arg4[%c0_6, %c0_7] : memref<256x128xbf16, #tpu.memory_space<vmem>>, vector<256x128xbf16>
    %cst_8 = arith.constant dense<0.000000e+00> : vector<16x128xf32>
    %10 = tpu.matmul %8, %9, %cst_8 {dimension_numbers = #tpu.dot_dimension_numbers<[1], [0], [0], [1], [0, 0, 1, 1], [], []>} : vector<16x256xbf16>, vector<256x128xbf16>, vector<16x128xf32> -> vector<16x128xf32>
    %c0_9 = arith.constant 0 : index
    %c0_10 = arith.constant 0 : index
    %11 = vector.load %arg5[%c0_9, %c0_10] : memref<1x128xf32, #tpu.memory_space<vmem>>, vector<1x128xf32>
    %12 = vector.broadcast %11 : vector<1x128xf32> to vector<16x128xf32>
    %13 = arith.addf %10, %12 : vector<16x128xf32>
    %cst_11 = arith.constant 0.000000e+00 : f32
    %14 = vector.broadcast %cst_11 : f32 to vector<16x128xf32>
    %15 = arith.maximumf %13, %14 : vector<16x128xf32>
    %16 = arith.truncf %15 : vector<16x128xf32> to vector<16x128xbf16>
    %c0_12 = arith.constant 0 : index
    %c0_13 = arith.constant 0 : index
    %17 = vector.load %arg6[%c0_12, %c0_13] : memref<128x256xbf16, #tpu.memory_space<vmem>>, vector<128x256xbf16>
    %cst_14 = arith.constant dense<0.000000e+00> : vector<16x256xf32>
    %18 = tpu.matmul %16, %17, %cst_14 {dimension_numbers = #tpu.dot_dimension_numbers<[1], [0], [0], [1], [0, 0, 1, 1], [], []>} : vector<16x128xbf16>, vector<128x256xbf16>, vector<16x256xf32> -> vector<16x256xf32>
    %c0_15 = arith.constant 0 : index
    %c0_16 = arith.constant 0 : index
    %19 = vector.load %arg7[%c0_15, %c0_16] : memref<1x256xf32, #tpu.memory_space<vmem>>, vector<1x256xf32>
    %20 = vector.broadcast %19 : vector<1x256xf32> to vector<16x256xf32>
    %21 = arith.addf %18, %20 : vector<16x256xf32>
    %cst_17 = arith.constant 0.000000e+00 : f32
    %22 = vector.broadcast %cst_17 : f32 to vector<16x256xf32>
    %23 = arith.maximumf %21, %22 : vector<16x256xf32>
    %24 = arith.truncf %23 : vector<16x256xf32> to vector<16x256xbf16>
    %c0_18 = arith.constant 0 : index
    %c0_19 = arith.constant 0 : index
    %25 = vector.load %arg8[%c0_18, %c0_19] : memref<256x128xbf16, #tpu.memory_space<vmem>>, vector<256x128xbf16>
    %cst_20 = arith.constant dense<0.000000e+00> : vector<16x128xf32>
    %26 = tpu.matmul %24, %25, %cst_20 {dimension_numbers = #tpu.dot_dimension_numbers<[1], [0], [0], [1], [0, 0, 1, 1], [], []>} : vector<16x256xbf16>, vector<256x128xbf16>, vector<16x128xf32> -> vector<16x128xf32>
    %c0_21 = arith.constant 0 : index
    %c0_22 = arith.constant 0 : index
    %27 = vector.load %arg9[%c0_21, %c0_22] : memref<1x128xf32, #tpu.memory_space<vmem>>, vector<1x128xf32>
    %28 = vector.broadcast %27 : vector<1x128xf32> to vector<16x128xf32>
    %29 = arith.addf %26, %28 : vector<16x128xf32>
    %cst_23 = arith.constant 0.000000e+00 : f32
    %30 = vector.broadcast %cst_23 : f32 to vector<16x128xf32>
    %31 = arith.maximumf %29, %30 : vector<16x128xf32>
    %c0_24 = arith.constant 0 : index
    %c0_25 = arith.constant 0 : index
    %32 = vector.load %arg10[%c0_24, %c0_25] : memref<16x128xf32, #tpu.memory_space<vmem>>, vector<16x128xf32>
    tpu.vector_store %arg10[%c0_24, %c0_25], %31 {strides = array<i32>} : memref<16x128xf32, #tpu.memory_space<vmem>>, vector<16x128xf32>,
    return
  }
  func.func @transform_0(%arg0: i32) -> (i32, i32) {
    %c0_i32 = arith.constant 0 : i32
    %c0_i32_0 = arith.constant 0 : i32
    return %arg0, %c0_i32 : i32, i32
  }
  func.func @transform_1(%arg0: i32) -> (i32, i32) {
    %c0_i32 = arith.constant 0 : i32
    %c0_i32_0 = arith.constant 0 : i32
    %c0_i32_1 = arith.constant 0 : i32
    return %c0_i32, %c0_i32_0 : i32, i32
  }
  func.func @transform_2(%arg0: i32) -> (i32, i32) {
    %c0_i32 = arith.constant 0 : i32
    %c0_i32_0 = arith.constant 0 : i32
    %c0_i32_1 = arith.constant 0 : i32
    return %c0_i32, %c0_i32_0 : i32, i32
  }
  func.func @transform_3(%arg0: i32) -> (i32, i32) {
    %c0_i32 = arith.constant 0 : i32
    %c0_i32_0 = arith.constant 0 : i32
    %c0_i32_1 = arith.constant 0 : i32
    return %c0_i32, %c0_i32_0 : i32, i32
  }
  func.func @transform_4(%arg0: i32) -> (i32, i32) {
    %c0_i32 = arith.constant 0 : i32
    %c0_i32_0 = arith.constant 0 : i32
    %c0_i32_1 = arith.constant 0 : i32
    return %c0_i32, %c0_i32_0 : i32, i32
  }
  func.func @transform_5(%arg0: i32) -> (i32, i32) {
    %c0_i32 = arith.constant 0 : i32
    %c0_i32_0 = arith.constant 0 : i32
    %c0_i32_1 = arith.constant 0 : i32
    return %c0_i32, %c0_i32_0 : i32, i32
  }
  func.func @transform_6(%arg0: i32) -> (i32, i32) {
    %c0_i32 = arith.constant 0 : i32
    %c0_i32_0 = arith.constant 0 : i32
    %c0_i32_1 = arith.constant 0 : i32
    return %c0_i32, %c0_i32_0 : i32, i32
  }
  func.func @transform_7(%arg0: i32) -> (i32, i32) {
    %c0_i32 = arith.constant 0 : i32
    %c0_i32_0 = arith.constant 0 : i32
    %c0_i32_1 = arith.constant 0 : i32
    return %c0_i32, %c0_i32_0 : i32, i32
  }
  func.func @transform_8(%arg0: i32) -> (i32, i32) {
    %c0_i32 = arith.constant 0 : i32
    %c0_i32_0 = arith.constant 0 : i32
    %c0_i32_1 = arith.constant 0 : i32
    return %c0_i32, %c0_i32_0 : i32, i32
  }
  func.func @transform_9(%arg0: i32) -> (i32, i32) {
    %c0_i32 = arith.constant 0 : i32
    %c0_i32_0 = arith.constant 0 : i32
    return %arg0, %c0_i32 : i32, i32
  }
}

</mosaic_0001>

<llo_original>
// kernel: tpu_custom_call.1
$region0: #{tpu_custom_call.1}
  #allocation0 [shape = 'u32[]', space=smem, size = 0x4, offset = 0x4, fixed_abs, tag = 'smem constant byte address 0x4 - core index']
  #allocation1 [shape = 'u32[144,128]{1,0:T(1,128)}', space=vmem, size = 0x12000, scoped, tag = 'internal scratch']
  %s0 = inlined_call_operand.hbm [shape: bf16[16,128], index: 0, kind: input, shape index: {}]
  %s1 = inlined_call_operand.hbm [shape: bf16[128,256], index: 1, kind: input, shape index: {}]
  %s2 = inlined_call_operand.vmem [shape: f32[1,256], index: 2, kind: input, shape index: {}]
  %s3 = inlined_call_operand.hbm [shape: bf16[256,128], index: 3, kind: input, shape index: {}]
  %s4 = inlined_call_operand.vmem [shape: f32[1,128], index: 4, kind: input, shape index: {}]
  %s5 = inlined_call_operand.hbm [shape: bf16[128,256], index: 5, kind: input, shape index: {}]
  %s6 = inlined_call_operand.vmem [shape: f32[1,256], index: 6, kind: input, shape index: {}]
  %s7 = inlined_call_operand.hbm [shape: bf16[256,128], index: 7, kind: input, shape index: {}]
  %s8 = inlined_call_operand.vmem [shape: f32[1,128], index: 8, kind: input, shape index: {}]
  %s9 = inlined_call_operand.hbm [shape: f32[16,128], index: 9, kind: output, shape index: {}]
  %s10 = sld [smem:[#allocation0]]
  $region66: #{tpu_custom_call.1} parent=0
    _
  %s12 = ssub.s32 1, %s10
  %s13 = scalar_select 0, %s12, %s10
  $region1: #{tpu_custom_call.1} parent=0
    #allocation2 [shape = 'u8[4096]{0}', space=vmem, size = 0x1000, scoped, tag = 'input window, operand 0, single buffered']
    #allocation3 [shape = 's32[1]{0}', space=sflag, size = 0x4, scoped, tag = 'scoped memory for tpu_custom_call.1']
    #allocation4 [shape = 's32[1]{0}', space=sflag, size = 0x4, scoped, tag = 'scoped memory for tpu_custom_call.1']
    #allocation5 [shape = 'u8[65536]{0}', space=vmem, size = 0x10000, scoped, tag = 'input window, operand 1, single buffered']
    #allocation6 [shape = 's32[1]{0}', space=sflag, size = 0x4, scoped, tag = 'scoped memory for tpu_custom_call.1']
    #allocation7 [shape = 'u8[65536]{0}', space=vmem, size = 0x10000, scoped, tag = 'input window, operand 3, single buffered']
    #allocation8 [shape = 'u8[65536]{0}', space=vmem, size = 0x10000, scoped, tag = 'input window, operand 5, single buffered']
    #allocation9 [shape = 's32[1]{0}', space=sflag, size = 0x4, scoped, tag = 'scoped memory for tpu_custom_call.1']
    #allocation10 [shape = 'u8[65536]{0}', space=vmem, size = 0x10000, scoped, tag = 'input window, operand 7, single buffered']
    #allocation11 [shape = 'u8[8192]{0}', space=vmem, size = 0x2000, scoped, tag = 'output window, operand 0, single buffered']
    %14 = vsyncpa [#allocation3], 0
    %15 = vsyncpa [#allocation6], 0
    %16 = vsyncpa [#allocation9], 0
    %17 = vsyncpa [#allocation4], 0
    // Predicated region
    $region2: #{tpu_custom_call.1} parent=1 // pred_check
      _
    $region3: #{tpu_custom_call.1} parent=1 // pred_check_branch
      %19 = sbr.rel (0) target = $region5
    $region4: #{tpu_custom_call.1} parent=1 // pred_region
      %s21 = ssub.s32 128, 128
      %22 = vsyncadd [#allocation3], %s21
      %s23 = sshll.u32 [#allocation2], 4
      %s24 = int_to_ptr.vmem [resolvable:$true] %s23
      %29 = dma.hbm_to_vmem [thread:$0]  %s0, 128, %s24, [#allocation3], 64, 64, 4
    $region5: #{tpu_custom_call.1} parent=1 // pred_fallthru
      _
    // Predicated region
    $region6: #{tpu_custom_call.1} parent=1 // pred_check
      _
    $region7: #{tpu_custom_call.1} parent=1 // pred_check_branch
      %31 = sbr.rel (0) target = $region9
    $region8: #{tpu_custom_call.1} parent=1 // pred_region
      %s33 = ssub.s32 2048, 2048
      %34 = vsyncadd [#allocation6], %s33
      %s35 = sshll.u32 [#allocation5], 4
      %s36 = int_to_ptr.vmem [resolvable:$true] %s35
      %41 = dma.hbm_to_vmem [thread:$0]  %s1, 2048, %s36, [#allocation6], 128, 128, 8
    $region9: #{tpu_custom_call.1} parent=1 // pred_fallthru
      _
    // Predicated region
    $region10: #{tpu_custom_call.1} parent=1 // pred_check
      _
    $region11: #{tpu_custom_call.1} parent=1 // pred_check_branch
      %43 = sbr.rel (0) target = $region13
    $region12: #{tpu_custom_call.1} parent=1 // pred_region
      _
    $region13: #{tpu_custom_call.1} parent=1 // pred_fallthru
      _
    // Predicated region
    $region14: #{tpu_custom_call.1} parent=1 // pred_check
      _
    $region15: #{tpu_custom_call.1} parent=1 // pred_check_branch
      %45 = sbr.rel (0) target = $region17
    $region16: #{tpu_custom_call.1} parent=1 // pred_region
      %s47 = ssub.s32 2048, 2048
      %48 = vsyncadd [#allocation6], %s47
      %s49 = sshll.u32 [#allocation7], 4
      %s50 = int_to_ptr.vmem [resolvable:$true] %s49
      %55 = dma.hbm_to_vmem [thread:$0]  %s3, 2048, %s50, [#allocation6], 64, 64, 4
    $region17: #{tpu_custom_call.1} parent=1 // pred_fallthru
      _
    // Predicated region
    $region18: #{tpu_custom_call.1} parent=1 // pred_check
      _
    $region19: #{tpu_custom_call.1} parent=1 // pred_check_branch
      %57 = sbr.rel (0) target = $region21
    $region20: #{tpu_custom_call.1} parent=1 // pred_region
      _
    $region21: #{tpu_custom_call.1} parent=1 // pred_fallthru
      _
    // Predicated region
    $region22: #{tpu_custom_call.1} parent=1 // pred_check
      _
    $region23: #{tpu_custom_call.1} parent=1 // pred_check_branch
      %59 = sbr.rel (0) target = $region25
    $region24: #{tpu_custom_call.1} parent=1 // pred_region
      %s61 = ssub.s32 2048, 2048
      %62 = vsyncadd [#allocation9], %s61
      %s63 = sshll.u32 [#allocation8], 4
      %s64 = int_to_ptr.vmem [resolvable:$true] %s63
      %69 = dma.hbm_to_vmem [thread:$0]  %s5, 2048, %s64, [#allocation9], 128, 128, 8
    $region25: #{tpu_custom_call.1} parent=1 // pred_fallthru
      _
    // Predicated region
    $region26: #{tpu_custom_call.1} parent=1 // pred_check
      _
    $region27: #{tpu_custom_call.1} parent=1 // pred_check_branch
      %71 = sbr.rel (0) target = $region29
    $region28: #{tpu_custom_call.1} parent=1 // pred_region
      _
    $region29: #{tpu_custom_call.1} parent=1 // pred_fallthru
      _
    // Predicated region
    $region30: #{tpu_custom_call.1} parent=1 // pred_check
      _
    $region31: #{tpu_custom_call.1} parent=1 // pred_check_branch
      %73 = sbr.rel (0) target = $region33
    $region32: #{tpu_custom_call.1} parent=1 // pred_region
      %s75 = ssub.s32 2048, 2048
      %76 = vsyncadd [#allocation9], %s75
      %s77 = sshll.u32 [#allocation10], 4
      %s78 = int_to_ptr.vmem [resolvable:$true] %s77
      %83 = dma.hbm_to_vmem [thread:$0]  %s7, 2048, %s78, [#allocation9], 64, 64, 4
    $region33: #{tpu_custom_call.1} parent=1 // pred_fallthru
      _
    // Predicated region
    $region34: #{tpu_custom_call.1} parent=1 // pred_check
      _
    $region35: #{tpu_custom_call.1} parent=1 // pred_check_branch
      %85 = sbr.rel (0) target = $region37
    $region36: #{tpu_custom_call.1} parent=1 // pred_region
      _
    $region37: #{tpu_custom_call.1} parent=1 // pred_fallthru
      _
    // Predicated region
    $region38: #{tpu_custom_call.1} parent=1 // pred_check
      _
    $region39: #{tpu_custom_call.1} parent=1 // pred_check_branch
      %87 = sbr.rel (0) target = $region41
    $region40: #{tpu_custom_call.1} parent=1 // pred_region
      %88 = dma.done [#allocation3], 128
    $region41: #{tpu_custom_call.1} parent=1 // pred_fallthru
      _
    // Predicated region
    $region42: #{tpu_custom_call.1} parent=1 // pred_check
      _
    $region43: #{tpu_custom_call.1} parent=1 // pred_check_branch
      %90 = sbr.rel (0) target = $region45
    $region44: #{tpu_custom_call.1} parent=1 // pred_region
      %91 = dma.done [#allocation6], 2048
    $region45: #{tpu_custom_call.1} parent=1 // pred_fallthru
      _
    // Predicated region
    $region46: #{tpu_custom_call.1} parent=1 // pred_check
      _
    $region47: #{tpu_custom_call.1} parent=1 // pred_check_branch
      %93 = sbr.rel (0) target = $region49
    $region48: #{tpu_custom_call.1} parent=1 // pred_region
      %94 = dma.done [#allocation6], 2048
    $region49: #{tpu_custom_call.1} parent=1 // pred_fallthru
      _
    // Predicated region
    $region50: #{tpu_custom_call.1} parent=1 // pred_check
      _
    $region51: #{tpu_custom_call.1} parent=1 // pred_check_branch
      %96 = sbr.rel (0) target = $region53
    $region52: #{tpu_custom_call.1} parent=1 // pred_region
      %97 = dma.done [#allocation9], 2048
    $region53: #{tpu_custom_call.1} parent=1 // pred_fallthru
      _
    // Predicated region
    $region54: #{tpu_custom_call.1} parent=1 // pred_check
      _
    $region55: #{tpu_custom_call.1} parent=1 // pred_check_branch
      %99 = sbr.rel (0) target = $region57
    $region56: #{tpu_custom_call.1} parent=1 // pred_region
      %100 = dma.done [#allocation9], 2048
    $region57: #{tpu_custom_call.1} parent=1 // pred_fallthru
      _
    %v102 = vld [vmem:[#allocation2] sm:$0xf]
    %v103 = vld [vmem:[#allocation2 + $0x4] sm:$0xf]
    %v104 = vld [vmem:[#allocation5] sm:$0xff]
    %v105 = vld [vmem:[#allocation5 + $0x8] sm:$0xff]
    %v106 = vld [vmem:[#allocation5 + $0x10] sm:$0xff]
    %v107 = vld [vmem:[#allocation5 + $0x18] sm:$0xff]
    %v108 = vld [vmem:[#allocation5 + $0x20] sm:$0xff]
    %v109 = vld [vmem:[#allocation5 + $0x28] sm:$0xff]
    %v110 = vld [vmem:[#allocation5 + $0x30] sm:$0xff]
    %v111 = vld [vmem:[#allocation5 + $0x38] sm:$0xff]
    %v112 = vld [vmem:[#allocation5 + $0x40] sm:$0xff]
    %v113 = vld [vmem:[#allocation5 + $0x48] sm:$0xff]
    %v114 = vld [vmem:[#allocation5 + $0x50] sm:$0xff]
    %v115 = vld [vmem:[#allocation5 + $0x58] sm:$0xff]
    %v116 = vld [vmem:[#allocation5 + $0x60] sm:$0xff]
    %v117 = vld [vmem:[#allocation5 + $0x68] sm:$0xff]
    %v118 = vld [vmem:[#allocation5 + $0x70] sm:$0xff]
    %v119 = vld [vmem:[#allocation5 + $0x78] sm:$0xff]
    %v120 = vld [vmem:[%s2] sm:$0x3]
    %v122 = vlaneseq
    %v123 = vshrl.u32 %v122, 7
    %v124 = vsub.s32 0, %v123
    %v125 = vrot.slane %v120, %v124
    %v126 = vlaneseq
    %v127 = vshrl.u32 %v126, 7
    %v128 = vsub.s32 1, %v127
    %v129 = vrot.slane %v120, %v128
    %v134 = vunpack.c.l.b16 %v102
    %v135 = vunpack.c.l.b16 %v103
    %v136 = vpack.c.b16 %v135, %v134
    %v154 = vunpack.c.l.b16 %v104
    %v155 = vunpack.c.h.b16 %v104
    %v156 = vunpack.c.l.b16 %v105
    %v157 = vunpack.c.h.b16 %v105
    %v158 = vunpack.c.l.b16 %v106
    %v159 = vunpack.c.h.b16 %v106
    %v160 = vunpack.c.l.b16 %v107
    %v161 = vunpack.c.h.b16 %v107
    %v162 = vunpack.c.l.b16 %v108
    %v163 = vunpack.c.h.b16 %v108
    %v164 = vunpack.c.l.b16 %v109
    %v165 = vunpack.c.h.b16 %v109
    %v166 = vunpack.c.l.b16 %v110
    %v167 = vunpack.c.h.b16 %v110
    %v168 = vunpack.c.l.b16 %v111
    %v169 = vunpack.c.h.b16 %v111
    %v170 = vunpack.c.l.b16 %v112
    %v171 = vunpack.c.h.b16 %v112
    %v172 = vunpack.c.l.b16 %v113
    %v173 = vunpack.c.h.b16 %v113
    %v174 = vunpack.c.l.b16 %v114
    %v175 = vunpack.c.h.b16 %v114
    %v176 = vunpack.c.l.b16 %v115
    %v177 = vunpack.c.h.b16 %v115
    %v178 = vunpack.c.l.b16 %v116
    %v179 = vunpack.c.h.b16 %v116
    %v180 = vunpack.c.l.b16 %v117
    %v181 = vunpack.c.h.b16 %v117
    %v182 = vunpack.c.l.b16 %v118
    %v183 = vunpack.c.h.b16 %v118
    %v184 = vunpack.c.l.b16 %v119
    %v185 = vunpack.c.h.b16 %v119
    %v186 = vpack.c.b16 %v156, %v154
    %v187 = vpack.c.b16 %v157, %v155
    %v188 = vpack.c.b16 %v160, %v158
    %v189 = vpack.c.b16 %v161, %v159
    %v190 = vpack.c.b16 %v164, %v162
    %v191 = vpack.c.b16 %v165, %v163
    %v192 = vpack.c.b16 %v168, %v166
    %v193 = vpack.c.b16 %v169, %v167
    %v194 = vpack.c.b16 %v172, %v170
    %v195 = vpack.c.b16 %v173, %v171
    %v196 = vpack.c.b16 %v176, %v174
    %v197 = vpack.c.b16 %v177, %v175
    %v198 = vpack.c.b16 %v180, %v178
    %v199 = vpack.c.b16 %v181, %v179
    %v200 = vpack.c.b16 %v184, %v182
    %v201 = vpack.c.b16 %v185, %v183
    %218 = vmatprep.subr.bf16.mxu0 %v187
    %219 = vmatpush1.bf16.msra.mxu0 %v186
    %220 = vmatprep.subr.bf16.mxu0 %v189
    %221 = vmatpush1.bf16.msra.mxu0 %v188
    %222 = vmatprep.subr.bf16.mxu0 %v191
    %223 = vmatpush1.bf16.msra.mxu0 %v190
    %224 = vmatprep.subr.bf16.mxu0 %v193
    %225 = vmatpush1.bf16.msra.mxu0 %v192
    %226 = vmatprep.subr.bf16.mxu0 %v195
    %227 = vmatpush1.bf16.msra.mxu0 %v194
    %228 = vmatprep.subr.bf16.mxu0 %v197
    %229 = vmatpush1.bf16.msra.mxu0 %v196
    %230 = vmatprep.subr.bf16.mxu0 %v199
    %231 = vmatpush1.bf16.msra.mxu0 %v198
    %232 = vmatprep.subr.bf16.mxu0 %v201
    %233 = vmatpush1.bf16.msra.mxu0 %v200
    %234 = vmatprep.subr.bf16.mxu0 0
    %235 = vmatpush1.bf16.msra.mxu0 0
    %236 = vmatprep.subr.bf16.mxu0 0
    %237 = vmatpush1.bf16.msra.mxu0 0
    %238 = vmatprep.subr.bf16.mxu0 0
    %239 = vmatpush1.bf16.msra.mxu0 0
    %240 = vmatprep.subr.bf16.mxu0 0
    %241 = vmatpush1.bf16.msra.mxu0 0
    %242 = vmatprep.subr.bf16.mxu0 0
    %243 = vmatpush1.bf16.msra.mxu0 0
    %244 = vmatprep.subr.bf16.mxu0 0
    %245 = vmatpush1.bf16.msra.mxu0 0
    %246 = vmatprep.subr.bf16.mxu0 0
    %247 = vmatpush1.bf16.msra.mxu0 0
    %248 = vmatprep.subr.bf16.mxu0 0
    %249 = vmatpush1.bf16.msra.mxu0 0
    %250 = vmatprep.mubr.bf16.mxu0 0
    %251 = vmatmul.mubr.bf16.gmra.mrb[0].mxu0 %v136
    %v252 = vpop.f32.mrb[0].mxu0
    %v253 = vadd.f32 %v125, %v252
    %v254 = vpop.f32.mrb[0].mxu0
    %v255 = vadd.f32 %v129, %v254
    %v256 = vpop.f32.mrb[0].mxu0
    %v257 = vadd.f32 %v125, %v256
    %v258 = vpop.f32.mrb[0].mxu0
    %v259 = vadd.f32 %v129, %v258
    %260 = vdwg.mxu0
    %v261 = vmax.f32 %v253, 0.0
    %v262 = vmax.f32 %v255, 0.0
    %v263 = vmax.f32 %v257, 0.0
    %v264 = vmax.f32 %v259, 0.0
    %v265 = vpack.c.bf16 %v263, %v261
    %v266 = vpack.c.bf16 %v264, %v262
    %v267 = vld [vmem:[#allocation7] sm:$0xf]
    %v268 = vld [vmem:[#allocation7 + $0x4] sm:$0xf]
    %v269 = vld [vmem:[#allocation7 + $0x8] sm:$0xf]
    %v270 = vld [vmem:[#allocation7 + $0xc] sm:$0xf]
    %v271 = vld [vmem:[#allocation7 + $0x10] sm:$0xf]
    %v272 = vld [vmem:[#allocation7 + $0x14] sm:$0xf]
    %v273 = vld [vmem:[#allocation7 + $0x18] sm:$0xf]
    %v274 = vld [vmem:[#allocation7 + $0x1c] sm:$0xf]
    %v275 = vld [vmem:[#allocation7 + $0x20] sm:$0xf]
    %v276 = vld [vmem:[#allocation7 + $0x24] sm:$0xf]
    %v277 = vld [vmem:[#allocation7 + $0x28] sm:$0xf]
    %v278 = vld [vmem:[#allocation7 + $0x2c] sm:$0xf]
    %v279 = vld [vmem:[#allocation7 + $0x30] sm:$0xf]
    %v280 = vld [vmem:[#allocation7 + $0x34] sm:$0xf]
    %v281 = vld [vmem:[#allocation7 + $0x38] sm:$0xf]
    %v282 = vld [vmem:[#allocation7 + $0x3c] sm:$0xf]
    %v283 = vld [vmem:[#allocation7 + $0x40] sm:$0xf]
    %v284 = vld [vmem:[#allocation7 + $0x44] sm:$0xf]
    %v285 = vld [vmem:[#allocation7 + $0x48] sm:$0xf]
    %v286 = vld [vmem:[#allocation7 + $0x4c] sm:$0xf]
    %v287 = vld [vmem:[#allocation7 + $0x50] sm:$0xf]
    %v288 = vld [vmem:[#allocation7 + $0x54] sm:$0xf]
    %v289 = vld [vmem:[#allocation7 + $0x58] sm:$0xf]
    %v290 = vld [vmem:[#allocation7 + $0x5c] sm:$0xf]
    %v291 = vld [vmem:[#allocation7 + $0x60] sm:$0xf]
    %v292 = vld [vmem:[#allocation7 + $0x64] sm:$0xf]
    %v293 = vld [vmem:[#allocation7 + $0x68] sm:$0xf]
    %v294 = vld [vmem:[#allocation7 + $0x6c] sm:$0xf]
    %v295 = vld [vmem:[#allocation7 + $0x70] sm:$0xf]
    %v296 = vld [vmem:[#allocation7 + $0x74] sm:$0xf]
    %v297 = vld [vmem:[#allocation7 + $0x78] sm:$0xf]
    %v298 = vld [vmem:[#allocation7 + $0x7c] sm:$0xf]
    %v299 = vld [vmem:[%s4] sm:$0x1]
    %v301 = vlaneseq
    %v302 = vshrl.u32 %v301, 7
    %v303 = vsub.s32 0, %v302
    %v304 = vrot.slane %v299, %v303
    %v338 = vunpack.c.l.b16 %v267
    %v339 = vunpack.c.l.b16 %v268
    %v340 = vunpack.c.l.b16 %v269
    %v341 = vunpack.c.l.b16 %v270
    %v342 = vunpack.c.l.b16 %v271
    %v343 = vunpack.c.l.b16 %v272
    %v344 = vunpack.c.l.b16 %v273
    %v345 = vunpack.c.l.b16 %v274
    %v346 = vunpack.c.l.b16 %v275
    %v347 = vunpack.c.l.b16 %v276
    %v348 = vunpack.c.l.b16 %v277
    %v349 = vunpack.c.l.b16 %v278
    %v350 = vunpack.c.l.b16 %v279
    %v351 = vunpack.c.l.b16 %v280
    %v352 = vunpack.c.l.b16 %v281
    %v353 = vunpack.c.l.b16 %v282
    %v354 = vunpack.c.l.b16 %v283
    %v355 = vunpack.c.l.b16 %v284
    %v356 = vunpack.c.l.b16 %v285
    %v357 = vunpack.c.l.b16 %v286
    %v358 = vunpack.c.l.b16 %v287
    %v359 = vunpack.c.l.b16 %v288
    %v360 = vunpack.c.l.b16 %v289
    %v361 = vunpack.c.l.b16 %v290
    %v362 = vunpack.c.l.b16 %v291
    %v363 = vunpack.c.l.b16 %v292
    %v364 = vunpack.c.l.b16 %v293
    %v365 = vunpack.c.l.b16 %v294
    %v366 = vunpack.c.l.b16 %v295
    %v367 = vunpack.c.l.b16 %v296
    %v368 = vunpack.c.l.b16 %v297
    %v369 = vunpack.c.l.b16 %v298
    %v370 = vpack.c.b16 %v339, %v338
    %v371 = vpack.c.b16 %v341, %v340
    %v372 = vpack.c.b16 %v343, %v342
    %v373 = vpack.c.b16 %v345, %v344
    %v374 = vpack.c.b16 %v347, %v346
    %v375 = vpack.c.b16 %v349, %v348
    %v376 = vpack.c.b16 %v351, %v350
    %v377 = vpack.c.b16 %v353, %v352
    %v378 = vpack.c.b16 %v355, %v354
    %v379 = vpack.c.b16 %v357, %v356
    %v380 = vpack.c.b16 %v359, %v358
    %v381 = vpack.c.b16 %v361, %v360
    %v382 = vpack.c.b16 %v363, %v362
    %v383 = vpack.c.b16 %v365, %v364
    %v384 = vpack.c.b16 %v367, %v366
    %v385 = vpack.c.b16 %v369, %v368
    %402 = vmatprep.subr.bf16.mxu0 0
    %403 = vmatpush1.bf16.msra.mxu0 %v370
    %404 = vmatprep.subr.bf16.mxu0 0
    %405 = vmatpush1.bf16.msra.mxu0 %v371
    %406 = vmatprep.subr.bf16.mxu0 0
    %407 = vmatpush1.bf16.msra.mxu0 %v372
    %408 = vmatprep.subr.bf16.mxu0 0
    %409 = vmatpush1.bf16.msra.mxu0 %v373
    %410 = vmatprep.subr.bf16.mxu0 0
    %411 = vmatpush1.bf16.msra.mxu0 %v374
    %412 = vmatprep.subr.bf16.mxu0 0
    %413 = vmatpush1.bf16.msra.mxu0 %v375
    %414 = vmatprep.subr.bf16.mxu0 0
    %415 = vmatpush1.bf16.msra.mxu0 %v376
    %416 = vmatprep.subr.bf16.mxu0 0
    %417 = vmatpush1.bf16.msra.mxu0 %v377
    %418 = vmatprep.subr.bf16.mxu0 0
    %419 = vmatpush1.bf16.msra.mxu0 %v378
    %420 = vmatprep.subr.bf16.mxu0 0
    %421 = vmatpush1.bf16.msra.mxu0 %v379
    %422 = vmatprep.subr.bf16.mxu0 0
    %423 = vmatpush1.bf16.msra.mxu0 %v380
    %424 = vmatprep.subr.bf16.mxu0 0
    %425 = vmatpush1.bf16.msra.mxu0 %v381
    %426 = vmatprep.subr.bf16.mxu0 0
    %427 = vmatpush1.bf16.msra.mxu0 %v382
    %428 = vmatprep.subr.bf16.mxu0 0
    %429 = vmatpush1.bf16.msra.mxu0 %v383
    %430 = vmatprep.subr.bf16.mxu0 0
    %431 = vmatpush1.bf16.msra.mxu0 %v384
    %432 = vmatprep.subr.bf16.mxu0 0
    %433 = vmatpush1.bf16.msra.mxu0 %v385
    %434 = vmatprep.mubr.bf16.mxu0 %v266
    %435 = vmatmul.mubr.bf16.gmra.mrb[0].mxu0 %v265
    %v436 = vpop.f32.mrb[0].mxu0
    %v437 = vadd.f32 %v304, %v436
    %v438 = vpop.f32.mrb[0].mxu0
    %v439 = vpop.f32.mrb[0].mxu0
    %v440 = vadd.f32 %v304, %v439
    %v441 = vpop.f32.mrb[0].mxu0
    %442 = vdwg.mxu0
    %v443 = vmax.f32 %v437, 0.0
    %v444 = vmax.f32 %v440, 0.0
    %v445 = vpack.c.bf16 %v444, %v443
    %v446 = vld [vmem:[#allocation8] sm:$0xff]
    %v447 = vld [vmem:[#allocation8 + $0x8] sm:$0xff]
    %v448 = vld [vmem:[#allocation8 + $0x10] sm:$0xff]
    %v449 = vld [vmem:[#allocation8 + $0x18] sm:$0xff]
    %v450 = vld [vmem:[#allocation8 + $0x20] sm:$0xff]
    %v451 = vld [vmem:[#allocation8 + $0x28] sm:$0xff]
    %v452 = vld [vmem:[#allocation8 + $0x30] sm:$0xff]
    %v453 = vld [vmem:[#allocation8 + $0x38] sm:$0xff]
    %v454 = vld [vmem:[#allocation8 + $0x40] sm:$0xff]
    %v455 = vld [vmem:[#allocation8 + $0x48] sm:$0xff]
    %v456 = vld [vmem:[#allocation8 + $0x50] sm:$0xff]
    %v457 = vld [vmem:[#allocation8 + $0x58] sm:$0xff]
    %v458 = vld [vmem:[#allocation8 + $0x60] sm:$0xff]
    %v459 = vld [vmem:[#allocation8 + $0x68] sm:$0xff]
    %v460 = vld [vmem:[#allocation8 + $0x70] sm:$0xff]
    %v461 = vld [vmem:[#allocation8 + $0x78] sm:$0xff]
    %v462 = vld [vmem:[%s6] sm:$0x3]
    %v464 = vlaneseq
    %v465 = vshrl.u32 %v464, 7
    %v466 = vsub.s32 0, %v465
    %v467 = vrot.slane %v462, %v466
    %v468 = vlaneseq
    %v469 = vshrl.u32 %v468, 7
    %v470 = vsub.s32 1, %v469
    %v471 = vrot.slane %v462, %v470
    %v490 = vunpack.c.l.b16 %v446
    %v491 = vunpack.c.h.b16 %v446
    %v492 = vunpack.c.l.b16 %v447
    %v493 = vunpack.c.h.b16 %v447
    %v494 = vunpack.c.l.b16 %v448
    %v495 = vunpack.c.h.b16 %v448
    %v496 = vunpack.c.l.b16 %v449
    %v497 = vunpack.c.h.b16 %v449
    %v498 = vunpack.c.l.b16 %v450
    %v499 = vunpack.c.h.b16 %v450
    %v500 = vunpack.c.l.b16 %v451
    %v501 = vunpack.c.h.b16 %v451
    %v502 = vunpack.c.l.b16 %v452
    %v503 = vunpack.c.h.b16 %v452
    %v504 = vunpack.c.l.b16 %v453
    %v505 = vunpack.c.h.b16 %v453
    %v506 = vunpack.c.l.b16 %v454
    %v507 = vunpack.c.h.b16 %v454
    %v508 = vunpack.c.l.b16 %v455
    %v509 = vunpack.c.h.b16 %v455
    %v510 = vunpack.c.l.b16 %v456
    %v511 = vunpack.c.h.b16 %v456
    %v512 = vunpack.c.l.b16 %v457
    %v513 = vunpack.c.h.b16 %v457
    %v514 = vunpack.c.l.b16 %v458
    %v515 = vunpack.c.h.b16 %v458
    %v516 = vunpack.c.l.b16 %v459
    %v517 = vunpack.c.h.b16 %v459
    %v518 = vunpack.c.l.b16 %v460
    %v519 = vunpack.c.h.b16 %v460
    %v520 = vunpack.c.l.b16 %v461
    %v521 = vunpack.c.h.b16 %v461
    %v522 = vpack.c.b16 %v492, %v490
    %v523 = vpack.c.b16 %v493, %v491
    %v524 = vpack.c.b16 %v496, %v494
    %v525 = vpack.c.b16 %v497, %v495
    %v526 = vpack.c.b16 %v500, %v498
    %v527 = vpack.c.b16 %v501, %v499
    %v528 = vpack.c.b16 %v504, %v502
    %v529 = vpack.c.b16 %v505, %v503
    %v530 = vpack.c.b16 %v508, %v506
    %v531 = vpack.c.b16 %v509, %v507
    %v532 = vpack.c.b16 %v512, %v510
    %v533 = vpack.c.b16 %v513, %v511
    %v534 = vpack.c.b16 %v516, %v514
    %v535 = vpack.c.b16 %v517, %v515
    %v536 = vpack.c.b16 %v520, %v518
    %v537 = vpack.c.b16 %v521, %v519
    %554 = vmatprep.subr.bf16.mxu0 %v523
    %555 = vmatpush1.bf16.msra.mxu0 %v522
    %556 = vmatprep.subr.bf16.mxu0 %v525
    %557 = vmatpush1.bf16.msra.mxu0 %v524
    %558 = vmatprep.subr.bf16.mxu0 %v527
    %559 = vmatpush1.bf16.msra.mxu0 %v526
    %560 = vmatprep.subr.bf16.mxu0 %v529
    %561 = vmatpush1.bf16.msra.mxu0 %v528
    %562 = vmatprep.subr.bf16.mxu0 %v531
    %563 = vmatpush1.bf16.msra.mxu0 %v530
    %564 = vmatprep.subr.bf16.mxu0 %v533
    %565 = vmatpush1.bf16.msra.mxu0 %v532
    %566 = vmatprep.subr.bf16.mxu0 %v535
    %567 = vmatpush1.bf16.msra.mxu0 %v534
    %568 = vmatprep.subr.bf16.mxu0 %v537
    %569 = vmatpush1.bf16.msra.mxu0 %v536
    %570 = vmatprep.subr.bf16.mxu0 0
    %571 = vmatpush1.bf16.msra.mxu0 0
    %572 = vmatprep.subr.bf16.mxu0 0
    %573 = vmatpush1.bf16.msra.mxu0 0
    %574 = vmatprep.subr.bf16.mxu0 0
    %575 = vmatpush1.bf16.msra.mxu0 0
    %576 = vmatprep.subr.bf16.mxu0 0
    %577 = vmatpush1.bf16.msra.mxu0 0
    %578 = vmatprep.subr.bf16.mxu0 0
    %579 = vmatpush1.bf16.msra.mxu0 0
    %580 = vmatprep.subr.bf16.mxu0 0
    %581 = vmatpush1.bf16.msra.mxu0 0
    %582 = vmatprep.subr.bf16.mxu0 0
    %583 = vmatpush1.bf16.msra.mxu0 0
    %584 = vmatprep.subr.bf16.mxu0 0
    %585 = vmatpush1.bf16.msra.mxu0 0
    %586 = vmatprep.mubr.bf16.mxu0 0
    %587 = vmatmul.mubr.bf16.gmra.mrb[0].mxu0 %v445
    %v588 = vpop.f32.mrb[0].mxu0
    %v589 = vadd.f32 %v467, %v588
    %v590 = vpop.f32.mrb[0].mxu0
    %v591 = vadd.f32 %v471, %v590
    %v592 = vpop.f32.mrb[0].mxu0
    %v593 = vadd.f32 %v467, %v592
    %v594 = vpop.f32.mrb[0].mxu0
    %v595 = vadd.f32 %v471, %v594
    %596 = vdwg.mxu0
    %v597 = vmax.f32 %v589, 0.0
    %v598 = vmax.f32 %v591, 0.0
    %v599 = vmax.f32 %v593, 0.0
    %v600 = vmax.f32 %v595, 0.0
    %v601 = vpack.c.bf16 %v599, %v597
    %v602 = vpack.c.bf16 %v600, %v598
    %v603 = vld [vmem:[#allocation10] sm:$0xf]
    %v604 = vld [vmem:[#allocation10 + $0x4] sm:$0xf]
    %v605 = vld [vmem:[#allocation10 + $0x8] sm:$0xf]
    %v606 = vld [vmem:[#allocation10 + $0xc] sm:$0xf]
    %v607 = vld [vmem:[#allocation10 + $0x10] sm:$0xf]
    %v608 = vld [vmem:[#allocation10 + $0x14] sm:$0xf]
    %v609 = vld [vmem:[#allocation10 + $0x18] sm:$0xf]
    %v610 = vld [vmem:[#allocation10 + $0x1c] sm:$0xf]
    %v611 = vld [vmem:[#allocation10 + $0x20] sm:$0xf]
    %v612 = vld [vmem:[#allocation10 + $0x24] sm:$0xf]
    %v613 = vld [vmem:[#allocation10 + $0x28] sm:$0xf]
    %v614 = vld [vmem:[#allocation10 + $0x2c] sm:$0xf]
    %v615 = vld [vmem:[#allocation10 + $0x30] sm:$0xf]
    %v616 = vld [vmem:[#allocation10 + $0x34] sm:$0xf]
    %v617 = vld [vmem:[#allocation10 + $0x38] sm:$0xf]
    %v618 = vld [vmem:[#allocation10 + $0x3c] sm:$0xf]
    %v619 = vld [vmem:[#allocation10 + $0x40] sm:$0xf]
    %v620 = vld [vmem:[#allocation10 + $0x44] sm:$0xf]
    %v621 = vld [vmem:[#allocation10 + $0x48] sm:$0xf]
    %v622 = vld [vmem:[#allocation10 + $0x4c] sm:$0xf]
    %v623 = vld [vmem:[#allocation10 + $0x50] sm:$0xf]
    %v624 = vld [vmem:[#allocation10 + $0x54] sm:$0xf]
    %v625 = vld [vmem:[#allocation10 + $0x58] sm:$0xf]
    %v626 = vld [vmem:[#allocation10 + $0x5c] sm:$0xf]
    %v627 = vld [vmem:[#allocation10 + $0x60] sm:$0xf]
    %v628 = vld [vmem:[#allocation10 + $0x64] sm:$0xf]
    %v629 = vld [vmem:[#allocation10 + $0x68] sm:$0xf]
    %v630 = vld [vmem:[#allocation10 + $0x6c] sm:$0xf]
    %v631 = vld [vmem:[#allocation10 + $0x70] sm:$0xf]
    %v632 = vld [vmem:[#allocation10 + $0x74] sm:$0xf]
    %v633 = vld [vmem:[#allocation10 + $0x78] sm:$0xf]
    %v634 = vld [vmem:[#allocation10 + $0x7c] sm:$0xf]
    %v635 = vld [vmem:[%s8] sm:$0x1]
    %v637 = vlaneseq
    %v638 = vshrl.u32 %v637, 7
    %v639 = vsub.s32 0, %v638
    %v640 = vrot.slane %v635, %v639
    %v674 = vunpack.c.l.b16 %v603
    %v675 = vunpack.c.l.b16 %v604
    %v676 = vunpack.c.l.b16 %v605
    %v677 = vunpack.c.l.b16 %v606
    %v678 = vunpack.c.l.b16 %v607
    %v679 = vunpack.c.l.b16 %v608
    %v680 = vunpack.c.l.b16 %v609
    %v681 = vunpack.c.l.b16 %v610
    %v682 = vunpack.c.l.b16 %v611
    %v683 = vunpack.c.l.b16 %v612
    %v684 = vunpack.c.l.b16 %v613
    %v685 = vunpack.c.l.b16 %v614
    %v686 = vunpack.c.l.b16 %v615
    %v687 = vunpack.c.l.b16 %v616
    %v688 = vunpack.c.l.b16 %v617
    %v689 = vunpack.c.l.b16 %v618
    %v690 = vunpack.c.l.b16 %v619
    %v691 = vunpack.c.l.b16 %v620
    %v692 = vunpack.c.l.b16 %v621
    %v693 = vunpack.c.l.b16 %v622
    %v694 = vunpack.c.l.b16 %v623
    %v695 = vunpack.c.l.b16 %v624
    %v696 = vunpack.c.l.b16 %v625
    %v697 = vunpack.c.l.b16 %v626
    %v698 = vunpack.c.l.b16 %v627
    %v699 = vunpack.c.l.b16 %v628
    %v700 = vunpack.c.l.b16 %v629
    %v701 = vunpack.c.l.b16 %v630
    %v702 = vunpack.c.l.b16 %v631
    %v703 = vunpack.c.l.b16 %v632
    %v704 = vunpack.c.l.b16 %v633
    %v705 = vunpack.c.l.b16 %v634
    %v706 = vpack.c.b16 %v675, %v674
    %v707 = vpack.c.b16 %v677, %v676
    %v708 = vpack.c.b16 %v679, %v678
    %v709 = vpack.c.b16 %v681, %v680
    %v710 = vpack.c.b16 %v683, %v682
    %v711 = vpack.c.b16 %v685, %v684
    %v712 = vpack.c.b16 %v687, %v686
    %v713 = vpack.c.b16 %v689, %v688
    %v714 = vpack.c.b16 %v691, %v690
    %v715 = vpack.c.b16 %v693, %v692
    %v716 = vpack.c.b16 %v695, %v694
    %v717 = vpack.c.b16 %v697, %v696
    %v718 = vpack.c.b16 %v699, %v698
    %v719 = vpack.c.b16 %v701, %v700
    %v720 = vpack.c.b16 %v703, %v702
    %v721 = vpack.c.b16 %v705, %v704
    %738 = vmatprep.subr.bf16.mxu0 0
    %739 = vmatpush1.bf16.msra.mxu0 %v706
    %740 = vmatprep.subr.bf16.mxu0 0
    %741 = vmatpush1.bf16.msra.mxu0 %v707
    %742 = vmatprep.subr.bf16.mxu0 0
    %743 = vmatpush1.bf16.msra.mxu0 %v708
    %744 = vmatprep.subr.bf16.mxu0 0
    %745 = vmatpush1.bf16.msra.mxu0 %v709
    %746 = vmatprep.subr.bf16.mxu0 0
    %747 = vmatpush1.bf16.msra.mxu0 %v710
    %748 = vmatprep.subr.bf16.mxu0 0
    %749 = vmatpush1.bf16.msra.mxu0 %v711
    %750 = vmatprep.subr.bf16.mxu0 0
    %751 = vmatpush1.bf16.msra.mxu0 %v712
    %752 = vmatprep.subr.bf16.mxu0 0
    %753 = vmatpush1.bf16.msra.mxu0 %v713
    %754 = vmatprep.subr.bf16.mxu0 0
    %755 = vmatpush1.bf16.msra.mxu0 %v714
    %756 = vmatprep.subr.bf16.mxu0 0
    %757 = vmatpush1.bf16.msra.mxu0 %v715
    %758 = vmatprep.subr.bf16.mxu0 0
    %759 = vmatpush1.bf16.msra.mxu0 %v716
    %760 = vmatprep.subr.bf16.mxu0 0
    %761 = vmatpush1.bf16.msra.mxu0 %v717
    %762 = vmatprep.subr.bf16.mxu0 0
    %763 = vmatpush1.bf16.msra.mxu0 %v718
    %764 = vmatprep.subr.bf16.mxu0 0
    %765 = vmatpush1.bf16.msra.mxu0 %v719
    %766 = vmatprep.subr.bf16.mxu0 0
    %767 = vmatpush1.bf16.msra.mxu0 %v720
    %768 = vmatprep.subr.bf16.mxu0 0
    %769 = vmatpush1.bf16.msra.mxu0 %v721
    %770 = vmatprep.mubr.bf16.mxu0 %v602
    %771 = vmatmul.mubr.bf16.gmra.mrb[0].mxu0 %v601
    %v772 = vpop.f32.mrb[0].mxu0
    %v773 = vadd.f32 %v640, %v772
    %v774 = vpop.f32.mrb[0].mxu0
    %v775 = vpop.f32.mrb[0].mxu0
    %v776 = vadd.f32 %v640, %v775
    %v777 = vpop.f32.mrb[0].mxu0
    %778 = vdwg.mxu0
    %v779 = vmax.f32 %v773, 0.0
    %v780 = vmax.f32 %v776, 0.0
    %781 = vst [vmem:[#allocation11] sm:$0xff] %v779
    %782 = vst [vmem:[#allocation11 + $0x8] sm:$0xff] %v780
    // Predicated region
    $region58: #{tpu_custom_call.1} parent=1 // pred_check
      _
    $region59: #{tpu_custom_call.1} parent=1 // pred_check_branch
      %784 = sbr.rel (0) target = $region61
    $region60: #{tpu_custom_call.1} parent=1 // pred_region
      %s786 = ssub.s32 256, 256
      %787 = vsyncadd [#allocation4], %s786
      %s788 = sshll.u32 [#allocation11], 4
      %s789 = int_to_ptr.vmem [resolvable:$true] %s788
      %794 = dma.vmem_to_hbm [thread:$0]  %s789, 256, %s9, [#allocation4], 128, 128, 8
    $region61: #{tpu_custom_call.1} parent=1 // pred_fallthru
      _
    // Predicated region
    $region62: #{tpu_custom_call.1} parent=1 // pred_check
      _
    $region63: #{tpu_custom_call.1} parent=1 // pred_check_branch
      %796 = sbr.rel (0) target = $region65
    $region64: #{tpu_custom_call.1} parent=1 // pred_region
      %797 = dma.done [#allocation4], 256
    $region65: #{tpu_custom_call.1} parent=1 // pred_fallthru
      _
    %798 = vsyncpa [#allocation3], 1
    %799 = vsyncpa [#allocation6], 1
    %800 = vsyncpa [#allocation9], 1
    %801 = vsyncpa [#allocation4], 1

// kernel: tpu_custom_call.1
$region0: #{tpu_custom_call.1}
  #allocation0 [shape = 'u32[]', space=smem, size = 0x4, offset = 0x4, fixed_abs, tag = 'smem constant byte address 0x4 - core index']
  #allocation1 [shape = 'u32[144,128]{1,0:T(1,128)}', space=vmem, size = 0x12000, scoped, tag = 'internal scratch']
  %s0 = inlined_call_operand.hbm [shape: bf16[16,128], index: 0, kind: input, shape index: {}]
  %s1 = inlined_call_operand.hbm [shape: bf16[128,256], index: 1, kind: input, shape index: {}]
  %s2 = inlined_call_operand.vmem [shape: f32[1,256], index: 2, kind: input, shape index: {}]
  %s3 = inlined_call_operand.hbm [shape: bf16[256,128], index: 3, kind: input, shape index: {}]
  %s4 = inlined_call_operand.vmem [shape: f32[1,128], index: 4, kind: input, shape index: {}]
  %s5 = inlined_call_operand.hbm [shape: bf16[128,256], index: 5, kind: input, shape index: {}]
  %s6 = inlined_call_operand.vmem [shape: f32[1,256], index: 6, kind: input, shape index: {}]
  %s7 = inlined_call_operand.hbm [shape: bf16[256,128], index: 7, kind: input, shape index: {}]
  %s8 = inlined_call_operand.vmem [shape: f32[1,128], index: 8, kind: input, shape index: {}]
  %s9 = inlined_call_operand.hbm [shape: f32[16,128], index: 9, kind: output, shape index: {}]
  %s10 = sld [smem:[#allocation0]]
  $region66: #{tpu_custom_call.1} parent=0
    _
  %s12 = ssub.s32 1, %s10
  %s13 = scalar_select 0, %s12, %s10
  $region1: #{tpu_custom_call.1} parent=0
    #allocation2 [shape = 'u8[4096]{0}', space=vmem, size = 0x1000, scoped, tag = 'input window, operand 0, single buffered']
    #allocation3 [shape = 's32[1]{0}', space=sflag, size = 0x4, scoped, tag = 'scoped memory for tpu_custom_call.1']
    #allocation4 [shape = 's32[1]{0}', space=sflag, size = 0x4, scoped, tag = 'scoped memory for tpu_custom_call.1']
    #allocation5 [shape = 'u8[65536]{0}', space=vmem, size = 0x10000, scoped, tag = 'input window, operand 1, single buffered']
    #allocation6 [shape = 's32[1]{0}', space=sflag, size = 0x4, scoped, tag = 'scoped memory for tpu_custom_call.1']
    #allocation7 [shape = 'u8[65536]{0}', space=vmem, size = 0x10000, scoped, tag = 'input window, operand 3, single buffered']
    #allocation8 [shape = 'u8[65536]{0}', space=vmem, size = 0x10000, scoped, tag = 'input window, operand 5, single buffered']
    #allocation9 [shape = 's32[1]{0}', space=sflag, size = 0x4, scoped, tag = 'scoped memory for tpu_custom_call.1']
    #allocation10 [shape = 'u8[65536]{0}', space=vmem, size = 0x10000, scoped, tag = 'input window, operand 7, single buffered']
    #allocation11 [shape = 'u8[8192]{0}', space=vmem, size = 0x2000, scoped, tag = 'output window, operand 0, single buffered']
    %14 = vsyncpa [#allocation3], 0
    %15 = vsyncpa [#allocation6], 0
    %16 = vsyncpa [#allocation9], 0
    %17 = vsyncpa [#allocation4], 0
    // Predicated region
    $region2: #{tpu_custom_call.1} parent=1 // pred_check
      _
    $region3: #{tpu_custom_call.1} parent=1 // pred_check_branch
      %19 = sbr.rel (0) target = $region5
    $region4: #{tpu_custom_call.1} parent=1 // pred_region
      %s21 = ssub.s32 128, 128
      %22 = vsyncadd [#allocation3], %s21
      %s23 = sshll.u32 [#allocation2], 4
      %s24 = int_to_ptr.vmem [resolvable:$true] %s23
      %29 = dma.hbm_to_vmem [thread:$0]  %s0, 128, %s24, [#allocation3], 64, 64, 4
    $region5: #{tpu_custom_call.1} parent=1 // pred_fallthru
      _
    // Predicated region
    $region6: #{tpu_custom_call.1} parent=1 // pred_check
      _
    $region7: #{tpu_custom_call.1} parent=1 // pred_check_branch
      %31 = sbr.rel (0) target = $region9
    $region8: #{tpu_custom_call.1} parent=1 // pred_region
      %s33 = ssub.s32 2048, 2048
      %34 = vsyncadd [#allocation6], %s33
      %s35 = sshll.u32 [#allocation5], 4
      %s36 = int_to_ptr.vmem [resolvable:$true] %s35
      %41 = dma.hbm_to_vmem [thread:$0]  %s1, 2048, %s36, [#allocation6], 128, 128, 8
    $region9: #{tpu_custom_call.1} parent=1 // pred_fallthru
      _
    // Predicated region
    $region10: #{tpu_custom_call.1} parent=1 // pred_check
      _
    $region11: #{tpu_custom_call.1} parent=1 // pred_check_branch
      %43 = sbr.rel (0) target = $region13
    $region12: #{tpu_custom_call.1} parent=1 // pred_region
      _
    $region13: #{tpu_custom_call.1} parent=1 // pred_fallthru
      _
    // Predicated region
    $region14: #{tpu_custom_call.1} parent=1 // pred_check
      _
    $region15: #{tpu_custom_call.1} parent=1 // pred_check_branch
      %45 = sbr.rel (0) target = $region17
    $region16: #{tpu_custom_call.1} parent=1 // pred_region
      %s47 = ssub.s32 2048, 2048
      %48 = vsyncadd [#allocation6], %s47
      %s49 = sshll.u32 [#allocation7], 4
      %s50 = int_to_ptr.vmem [resolvable:$true] %s49
      %55 = dma.hbm_to_vmem [thread:$0]  %s3, 2048, %s50, [#allocation6], 64, 64, 4
    $region17: #{tpu_custom_call.1} parent=1 // pred_fallthru
      _
    // Predicated region
    $region18: #{tpu_custom_call.1} parent=1 // pred_check
      _
    $region19: #{tpu_custom_call.1} parent=1 // pred_check_branch
      %57 = sbr.rel (0) target = $region21
    $region20: #{tpu_custom_call.1} parent=1 // pred_region
      _
    $region21: #{tpu_custom_call.1} parent=1 // pred_fallthru
      _
    // Predicated region
    $region22: #{tpu_custom_call.1} parent=1 // pred_check
      _
    $region23: #{tpu_custom_call.1} parent=1 // pred_check_branch
      %59 = sbr.rel (0) target = $region25
    $region24: #{tpu_custom_call.1} parent=1 // pred_region
      %s61 = ssub.s32 2048, 2048
      %62 = vsyncadd [#allocation9], %s61
      %s63 = sshll.u32 [#allocation8], 4
      %s64 = int_to_ptr.vmem [resolvable:$true] %s63
      %69 = dma.hbm_to_vmem [thread:$0]  %s5, 2048, %s64, [#allocation9], 128, 128, 8
    $region25: #{tpu_custom_call.1} parent=1 // pred_fallthru
      _
    // Predicated region
    $region26: #{tpu_custom_call.1} parent=1 // pred_check
      _
    $region27: #{tpu_custom_call.1} parent=1 // pred_check_branch
      %71 = sbr.rel (0) target = $region29
    $region28: #{tpu_custom_call.1} parent=1 // pred_region
      _
    $region29: #{tpu_custom_call.1} parent=1 // pred_fallthru
      _
    // Predicated region
    $region30: #{tpu_custom_call.1} parent=1 // pred_check
      _
    $region31: #{tpu_custom_call.1} parent=1 // pred_check_branch
      %73 = sbr.rel (0) target = $region33
    $region32: #{tpu_custom_call.1} parent=1 // pred_region
      %s75 = ssub.s32 2048, 2048
      %76 = vsyncadd [#allocation9], %s75
      %s77 = sshll.u32 [#allocation10], 4
      %s78 = int_to_ptr.vmem [resolvable:$true] %s77
      %83 = dma.hbm_to_vmem [thread:$0]  %s7, 2048, %s78, [#allocation9], 64, 64, 4
    $region33: #{tpu_custom_call.1} parent=1 // pred_fallthru
      _
    // Predicated region
    $region34: #{tpu_custom_call.1} parent=1 // pred_check
      _
    $region35: #{tpu_custom_call.1} parent=1 // pred_check_branch
      %85 = sbr.rel (0) target = $region37
    $region36: #{tpu_custom_call.1} parent=1 // pred_region
      _
    $region37: #{tpu_custom_call.1} parent=1 // pred_fallthru
      _
    // Predicated region
    $region38: #{tpu_custom_call.1} parent=1 // pred_check
      _
    $region39: #{tpu_custom_call.1} parent=1 // pred_check_branch
      %87 = sbr.rel (0) target = $region41
    $region40: #{tpu_custom_call.1} parent=1 // pred_region
      %88 = dma.done [#allocation3], 128
    $region41: #{tpu_custom_call.1} parent=1 // pred_fallthru
      _
    // Predicated region
    $region42: #{tpu_custom_call.1} parent=1 // pred_check
      _
    $region43: #{tpu_custom_call.1} parent=1 // pred_check_branch
      %90 = sbr.rel (0) target = $region45
    $region44: #{tpu_custom_call.1} parent=1 // pred_region
      %91 = dma.done [#allocation6], 2048
    $region45: #{tpu_custom_call.1} parent=1 // pred_fallthru
      _
    // Predicated region
    $region46: #{tpu_custom_call.1} parent=1 // pred_check
      _
    $region47: #{tpu_custom_call.1} parent=1 // pred_check_branch
      %93 = sbr.rel (0) target = $region49
    $region48: #{tpu_custom_call.1} parent=1 // pred_region
      %94 = dma.done [#allocation6], 2048
    $region49: #{tpu_custom_call.1} parent=1 // pred_fallthru
      _
    // Predicated region
    $region50: #{tpu_custom_call.1} parent=1 // pred_check
      _
    $region51: #{tpu_custom_call.1} parent=1 // pred_check_branch
      %96 = sbr.rel (0) target = $region53
    $region52: #{tpu_custom_call.1} parent=1 // pred_region
      %97 = dma.done [#allocation9], 2048
    $region53: #{tpu_custom_call.1} parent=1 // pred_fallthru
      _
    // Predicated region
    $region54: #{tpu_custom_call.1} parent=1 // pred_check
      _
    $region55: #{tpu_custom_call.1} parent=1 // pred_check_branch
      %99 = sbr.rel (0) target = $region57
    $region56: #{tpu_custom_call.1} parent=1 // pred_region
      %100 = dma.done [#allocation9], 2048
    $region57: #{tpu_custom_call.1} parent=1 // pred_fallthru
      _
    %v102 = vld [vmem:[#allocation2] sm:$0xf]
    %v103 = vld [vmem:[#allocation2 + $0x4] sm:$0xf]
    %v104 = vld [vmem:[#allocation5] sm:$0xff]
    %v105 = vld [vmem:[#allocation5 + $0x8] sm:$0xff]
    %v106 = vld [vmem:[#allocation5 + $0x10] sm:$0xff]
    %v107 = vld [vmem:[#allocation5 + $0x18] sm:$0xff]
    %v108 = vld [vmem:[#allocation5 + $0x20] sm:$0xff]
    %v109 = vld [vmem:[#allocation5 + $0x28] sm:$0xff]
    %v110 = vld [vmem:[#allocation5 + $0x30] sm:$0xff]
    %v111 = vld [vmem:[#allocation5 + $0x38] sm:$0xff]
    %v112 = vld [vmem:[#allocation5 + $0x40] sm:$0xff]
    %v113 = vld [vmem:[#allocation5 + $0x48] sm:$0xff]
    %v114 = vld [vmem:[#allocation5 + $0x50] sm:$0xff]
    %v115 = vld [vmem:[#allocation5 + $0x58] sm:$0xff]
    %v116 = vld [vmem:[#allocation5 + $0x60] sm:$0xff]
    %v117 = vld [vmem:[#allocation5 + $0x68] sm:$0xff]
    %v118 = vld [vmem:[#allocation5 + $0x70] sm:$0xff]
    %v119 = vld [vmem:[#allocation5 + $0x78] sm:$0xff]
    %v120 = vld [vmem:[%s2] sm:$0x3]
    %v122 = vlaneseq
    %v123 = vshrl.u32 %v122, 7
    %v124 = vsub.s32 0, %v123
    %v125 = vrot.slane %v120, %v124
    %v126 = vlaneseq
    %v127 = vshrl.u32 %v126, 7
    %v128 = vsub.s32 1, %v127
    %v129 = vrot.slane %v120, %v128
    %v134 = vunpack.c.l.b16 %v102
    %v135 = vunpack.c.l.b16 %v103
    %v136 = vpack.c.b16 %v135, %v134
    %v154 = vunpack.c.l.b16 %v104
    %v155 = vunpack.c.h.b16 %v104
    %v156 = vunpack.c.l.b16 %v105
    %v157 = vunpack.c.h.b16 %v105
    %v158 = vunpack.c.l.b16 %v106
    %v159 = vunpack.c.h.b16 %v106
    %v160 = vunpack.c.l.b16 %v107
    %v161 = vunpack.c.h.b16 %v107
    %v162 = vunpack.c.l.b16 %v108
    %v163 = vunpack.c.h.b16 %v108
    %v164 = vunpack.c.l.b16 %v109
    %v165 = vunpack.c.h.b16 %v109
    %v166 = vunpack.c.l.b16 %v110
    %v167 = vunpack.c.h.b16 %v110
    %v168 = vunpack.c.l.b16 %v111
    %v169 = vunpack.c.h.b16 %v111
    %v170 = vunpack.c.l.b16 %v112
    %v171 = vunpack.c.h.b16 %v112
    %v172 = vunpack.c.l.b16 %v113
    %v173 = vunpack.c.h.b16 %v113
    %v174 = vunpack.c.l.b16 %v114
    %v175 = vunpack.c.h.b16 %v114
    %v176 = vunpack.c.l.b16 %v115
    %v177 = vunpack.c.h.b16 %v115
    %v178 = vunpack.c.l.b16 %v116
    %v179 = vunpack.c.h.b16 %v116
    %v180 = vunpack.c.l.b16 %v117
    %v181 = vunpack.c.h.b16 %v117
    %v182 = vunpack.c.l.b16 %v118
    %v183 = vunpack.c.h.b16 %v118
    %v184 = vunpack.c.l.b16 %v119
    %v185 = vunpack.c.h.b16 %v119
    %v186 = vpack.c.b16 %v156, %v154
    %v187 = vpack.c.b16 %v157, %v155
    %v188 = vpack.c.b16 %v160, %v158
    %v189 = vpack.c.b16 %v161, %v159
    %v190 = vpack.c.b16 %v164, %v162
    %v191 = vpack.c.b16 %v165, %v163
    %v192 = vpack.c.b16 %v168, %v166
    %v193 = vpack.c.b16 %v169, %v167
    %v194 = vpack.c.b16 %v172, %v170
    %v195 = vpack.c.b16 %v173, %v171
    %v196 = vpack.c.b16 %v176, %v174
    %v197 = vpack.c.b16 %v177, %v175
    %v198 = vpack.c.b16 %v180, %v178
    %v199 = vpack.c.b16 %v181, %v179
    %v200 = vpack.c.b16 %v184, %v182
    %v201 = vpack.c.b16 %v185, %v183
    %218 = vmatprep.subr.bf16.mxu0 %v187
    %219 = vmatpush1.bf16.msra.mxu0 %v186
    %220 = vmatprep.subr.bf16.mxu0 %v189
    %221 = vmatpush1.bf16.msra.mxu0 %v188
    %222 = vmatprep.subr.bf16.mxu0 %v191
    %223 = vmatpush1.bf16.msra.mxu0 %v190
    %224 = vmatprep.subr.bf16.mxu0 %v193
    %225 = vmatpush1.bf16.msra.mxu0 %v192
    %226 = vmatprep.subr.bf16.mxu0 %v195
    %227 = vmatpush1.bf16.msra.mxu0 %v194
    %228 = vmatprep.subr.bf16.mxu0 %v197
    %229 = vmatpush1.bf16.msra.mxu0 %v196
    %230 = vmatprep.subr.bf16.mxu0 %v199
    %231 = vmatpush1.bf16.msra.mxu0 %v198
    %232 = vmatprep.subr.bf16.mxu0 %v201
    %233 = vmatpush1.bf16.msra.mxu0 %v200
    %234 = vmatprep.subr.bf16.mxu0 0
    %235 = vmatpush1.bf16.msra.mxu0 0
    %236 = vmatprep.subr.bf16.mxu0 0
    %237 = vmatpush1.bf16.msra.mxu0 0
    %238 = vmatprep.subr.bf16.mxu0 0
    %239 = vmatpush1.bf16.msra.mxu0 0
    %240 = vmatprep.subr.bf16.mxu0 0
    %241 = vmatpush1.bf16.msra.mxu0 0
    %242 = vmatprep.subr.bf16.mxu0 0
    %243 = vmatpush1.bf16.msra.mxu0 0
    %244 = vmatprep.subr.bf16.mxu0 0
    %245 = vmatpush1.bf16.msra.mxu0 0
    %246 = vmatprep.subr.bf16.mxu0 0
    %247 = vmatpush1.bf16.msra.mxu0 0
    %248 = vmatprep.subr.bf16.mxu0 0
    %249 = vmatpush1.bf16.msra.mxu0 0
    %250 = vmatprep.mubr.bf16.mxu0 0
    %251 = vmatmul.mubr.bf16.gmra.mrb[0].mxu0 %v136
    %v252 = vpop.f32.mrb[0].mxu0
    %v253 = vadd.f32 %v125, %v252
    %v254 = vpop.f32.mrb[0].mxu0
    %v255 = vadd.f32 %v129, %v254
    %v256 = vpop.f32.mrb[0].mxu0
    %v257 = vadd.f32 %v125, %v256
    %v258 = vpop.f32.mrb[0].mxu0
    %v259 = vadd.f32 %v129, %v258
    %260 = vdwg.mxu0
    %v261 = vmax.f32 %v253, 0.0
    %v262 = vmax.f32 %v255, 0.0
    %v263 = vmax.f32 %v257, 0.0
    %v264 = vmax.f32 %v259, 0.0
    %v265 = vpack.c.bf16 %v263, %v261
    %v266 = vpack.c.bf16 %v264, %v262
    %v267 = vld [vmem:[#allocation7] sm:$0xf]
    %v268 = vld [vmem:[#allocation7 + $0x4] sm:$0xf]
    %v269 = vld [vmem:[#allocation7 + $0x8] sm:$0xf]
    %v270 = vld [vmem:[#allocation7 + $0xc] sm:$0xf]
    %v271 = vld [vmem:[#allocation7 + $0x10] sm:$0xf]
    %v272 = vld [vmem:[#allocation7 + $0x14] sm:$0xf]
    %v273 = vld [vmem:[#allocation7 + $0x18] sm:$0xf]
    %v274 = vld [vmem:[#allocation7 + $0x1c] sm:$0xf]
    %v275 = vld [vmem:[#allocation7 + $0x20] sm:$0xf]
    %v276 = vld [vmem:[#allocation7 + $0x24] sm:$0xf]
    %v277 = vld [vmem:[#allocation7 + $0x28] sm:$0xf]
    %v278 = vld [vmem:[#allocation7 + $0x2c] sm:$0xf]
    %v279 = vld [vmem:[#allocation7 + $0x30] sm:$0xf]
    %v280 = vld [vmem:[#allocation7 + $0x34] sm:$0xf]
    %v281 = vld [vmem:[#allocation7 + $0x38] sm:$0xf]
    %v282 = vld [vmem:[#allocation7 + $0x3c] sm:$0xf]
    %v283 = vld [vmem:[#allocation7 + $0x40] sm:$0xf]
    %v284 = vld [vmem:[#allocation7 + $0x44] sm:$0xf]
    %v285 = vld [vmem:[#allocation7 + $0x48] sm:$0xf]
    %v286 = vld [vmem:[#allocation7 + $0x4c] sm:$0xf]
    %v287 = vld [vmem:[#allocation7 + $0x50] sm:$0xf]
    %v288 = vld [vmem:[#allocation7 + $0x54] sm:$0xf]
    %v289 = vld [vmem:[#allocation7 + $0x58] sm:$0xf]
    %v290 = vld [vmem:[#allocation7 + $0x5c] sm:$0xf]
    %v291 = vld [vmem:[#allocation7 + $0x60] sm:$0xf]
    %v292 = vld [vmem:[#allocation7 + $0x64] sm:$0xf]
    %v293 = vld [vmem:[#allocation7 + $0x68] sm:$0xf]
    %v294 = vld [vmem:[#allocation7 + $0x6c] sm:$0xf]
    %v295 = vld [vmem:[#allocation7 + $0x70] sm:$0xf]
    %v296 = vld [vmem:[#allocation7 + $0x74] sm:$0xf]
    %v297 = vld [vmem:[#allocation7 + $0x78] sm:$0xf]
    %v298 = vld [vmem:[#allocation7 + $0x7c] sm:$0xf]
    %v299 = vld [vmem:[%s4] sm:$0x1]
    %v301 = vlaneseq
    %v302 = vshrl.u32 %v301, 7
    %v303 = vsub.s32 0, %v302
    %v304 = vrot.slane %v299, %v303
    %v338 = vunpack.c.l.b16 %v267
    %v339 = vunpack.c.l.b16 %v268
    %v340 = vunpack.c.l.b16 %v269
    %v341 = vunpack.c.l.b16 %v270
    %v342 = vunpack.c.l.b16 %v271
    %v343 = vunpack.c.l.b16 %v272
    %v344 = vunpack.c.l.b16 %v273
    %v345 = vunpack.c.l.b16 %v274
    %v346 = vunpack.c.l.b16 %v275
    %v347 = vunpack.c.l.b16 %v276
    %v348 = vunpack.c.l.b16 %v277
    %v349 = vunpack.c.l.b16 %v278
    %v350 = vunpack.c.l.b16 %v279
    %v351 = vunpack.c.l.b16 %v280
    %v352 = vunpack.c.l.b16 %v281
    %v353 = vunpack.c.l.b16 %v282
    %v354 = vunpack.c.l.b16 %v283
    %v355 = vunpack.c.l.b16 %v284
    %v356 = vunpack.c.l.b16 %v285
    %v357 = vunpack.c.l.b16 %v286
    %v358 = vunpack.c.l.b16 %v287
    %v359 = vunpack.c.l.b16 %v288
    %v360 = vunpack.c.l.b16 %v289
    %v361 = vunpack.c.l.b16 %v290
    %v362 = vunpack.c.l.b16 %v291
    %v363 = vunpack.c.l.b16 %v292
    %v364 = vunpack.c.l.b16 %v293
    %v365 = vunpack.c.l.b16 %v294
    %v366 = vunpack.c.l.b16 %v295
    %v367 = vunpack.c.l.b16 %v296
    %v368 = vunpack.c.l.b16 %v297
    %v369 = vunpack.c.l.b16 %v298
    %v370 = vpack.c.b16 %v339, %v338
    %v371 = vpack.c.b16 %v341, %v340
    %v372 = vpack.c.b16 %v343, %v342
    %v373 = vpack.c.b16 %v345, %v344
    %v374 = vpack.c.b16 %v347, %v346
    %v375 = vpack.c.b16 %v349, %v348
    %v376 = vpack.c.b16 %v351, %v350
    %v377 = vpack.c.b16 %v353, %v352
    %v378 = vpack.c.b16 %v355, %v354
    %v379 = vpack.c.b16 %v357, %v356
    %v380 = vpack.c.b16 %v359, %v358
    %v381 = vpack.c.b16 %v361, %v360
    %v382 = vpack.c.b16 %v363, %v362
    %v383 = vpack.c.b16 %v365, %v364
    %v384 = vpack.c.b16 %v367, %v366
    %v385 = vpack.c.b16 %v369, %v368
    %402 = vmatprep.subr.bf16.mxu0 0
    %403 = vmatpush1.bf16.msra.mxu0 %v370
    %404 = vmatprep.subr.bf16.mxu0 0
    %405 = vmatpush1.bf16.msra.mxu0 %v371
    %406 = vmatprep.subr.bf16.mxu0 0
    %407 = vmatpush1.bf16.msra.mxu0 %v372
    %408 = vmatprep.subr.bf16.mxu0 0
    %409 = vmatpush1.bf16.msra.mxu0 %v373
    %410 = vmatprep.subr.bf16.mxu0 0
    %411 = vmatpush1.bf16.msra.mxu0 %v374
    %412 = vmatprep.subr.bf16.mxu0 0
    %413 = vmatpush1.bf16.msra.mxu0 %v375
    %414 = vmatprep.subr.bf16.mxu0 0
    %415 = vmatpush1.bf16.msra.mxu0 %v376
    %416 = vmatprep.subr.bf16.mxu0 0
    %417 = vmatpush1.bf16.msra.mxu0 %v377
    %418 = vmatprep.subr.bf16.mxu0 0
    %419 = vmatpush1.bf16.msra.mxu0 %v378
    %420 = vmatprep.subr.bf16.mxu0 0
    %421 = vmatpush1.bf16.msra.mxu0 %v379
    %422 = vmatprep.subr.bf16.mxu0 0
    %423 = vmatpush1.bf16.msra.mxu0 %v380
    %424 = vmatprep.subr.bf16.mxu0 0
    %425 = vmatpush1.bf16.msra.mxu0 %v381
    %426 = vmatprep.subr.bf16.mxu0 0
    %427 = vmatpush1.bf16.msra.mxu0 %v382
    %428 = vmatprep.subr.bf16.mxu0 0
    %429 = vmatpush1.bf16.msra.mxu0 %v383
    %430 = vmatprep.subr.bf16.mxu0 0
    %431 = vmatpush1.bf16.msra.mxu0 %v384
    %432 = vmatprep.subr.bf16.mxu0 0
    %433 = vmatpush1.bf16.msra.mxu0 %v385
    %434 = vmatprep.mubr.bf16.mxu0 %v266
    %435 = vmatmul.mubr.bf16.gmra.mrb[0].mxu0 %v265
    %v436 = vpop.f32.mrb[0].mxu0
    %v437 = vadd.f32 %v304, %v436
    %v438 = vpop.f32.mrb[0].mxu0
    %v439 = vpop.f32.mrb[0].mxu0
    %v440 = vadd.f32 %v304, %v439
    %v441 = vpop.f32.mrb[0].mxu0
    %442 = vdwg.mxu0
    %v443 = vmax.f32 %v437, 0.0
    %v444 = vmax.f32 %v440, 0.0
    %v445 = vpack.c.bf16 %v444, %v443
    %v446 = vld [vmem:[#allocation8] sm:$0xff]
    %v447 = vld [vmem:[#allocation8 + $0x8] sm:$0xff]
    %v448 = vld [vmem:[#allocation8 + $0x10] sm:$0xff]
    %v449 = vld [vmem:[#allocation8 + $0x18] sm:$0xff]
    %v450 = vld [vmem:[#allocation8 + $0x20] sm:$0xff]
    %v451 = vld [vmem:[#allocation8 + $0x28] sm:$0xff]
    %v452 = vld [vmem:[#allocation8 + $0x30] sm:$0xff]
    %v453 = vld [vmem:[#allocation8 + $0x38] sm:$0xff]
    %v454 = vld [vmem:[#allocation8 + $0x40] sm:$0xff]
    %v455 = vld [vmem:[#allocation8 + $0x48] sm:$0xff]
    %v456 = vld [vmem:[#allocation8 + $0x50] sm:$0xff]
    %v457 = vld [vmem:[#allocation8 + $0x58] sm:$0xff]
    %v458 = vld [vmem:[#allocation8 + $0x60] sm:$0xff]
    %v459 = vld [vmem:[#allocation8 + $0x68] sm:$0xff]
    %v460 = vld [vmem:[#allocation8 + $0x70] sm:$0xff]
    %v461 = vld [vmem:[#allocation8 + $0x78] sm:$0xff]
    %v462 = vld [vmem:[%s6] sm:$0x3]
    %v464 = vlaneseq
    %v465 = vshrl.u32 %v464, 7
    %v466 = vsub.s32 0, %v465
    %v467 = vrot.slane %v462, %v466
    %v468 = vlaneseq
    %v469 = vshrl.u32 %v468, 7
    %v470 = vsub.s32 1, %v469
    %v471 = vrot.slane %v462, %v470
    %v490 = vunpack.c.l.b16 %v446
    %v491 = vunpack.c.h.b16 %v446
    %v492 = vunpack.c.l.b16 %v447
    %v493 = vunpack.c.h.b16 %v447
    %v494 = vunpack.c.l.b16 %v448
    %v495 = vunpack.c.h.b16 %v448
    %v496 = vunpack.c.l.b16 %v449
    %v497 = vunpack.c.h.b16 %v449
    %v498 = vunpack.c.l.b16 %v450
    %v499 = vunpack.c.h.b16 %v450
    %v500 = vunpack.c.l.b16 %v451
    %v501 = vunpack.c.h.b16 %v451
    %v502 = vunpack.c.l.b16 %v452
    %v503 = vunpack.c.h.b16 %v452
    %v504 = vunpack.c.l.b16 %v453
    %v505 = vunpack.c.h.b16 %v453
    %v506 = vunpack.c.l.b16 %v454
    %v507 = vunpack.c.h.b16 %v454
    %v508 = vunpack.c.l.b16 %v455
    %v509 = vunpack.c.h.b16 %v455
    %v510 = vunpack.c.l.b16 %v456
    %v511 = vunpack.c.h.b16 %v456
    %v512 = vunpack.c.l.b16 %v457
    %v513 = vunpack.c.h.b16 %v457
    %v514 = vunpack.c.l.b16 %v458
    %v515 = vunpack.c.h.b16 %v458
    %v516 = vunpack.c.l.b16 %v459
    %v517 = vunpack.c.h.b16 %v459
    %v518 = vunpack.c.l.b16 %v460
    %v519 = vunpack.c.h.b16 %v460
    %v520 = vunpack.c.l.b16 %v461
    %v521 = vunpack.c.h.b16 %v461
    %v522 = vpack.c.b16 %v492, %v490
    %v523 = vpack.c.b16 %v493, %v491
    %v524 = vpack.c.b16 %v496, %v494
    %v525 = vpack.c.b16 %v497, %v495
    %v526 = vpack.c.b16 %v500, %v498
    %v527 = vpack.c.b16 %v501, %v499
    %v528 = vpack.c.b16 %v504, %v502
    %v529 = vpack.c.b16 %v505, %v503
    %v530 = vpack.c.b16 %v508, %v506
    %v531 = vpack.c.b16 %v509, %v507
    %v532 = vpack.c.b16 %v512, %v510
    %v533 = vpack.c.b16 %v513, %v511
    %v534 = vpack.c.b16 %v516, %v514
    %v535 = vpack.c.b16 %v517, %v515
    %v536 = vpack.c.b16 %v520, %v518
    %v537 = vpack.c.b16 %v521, %v519
    %554 = vmatprep.subr.bf16.mxu0 %v523
    %555 = vmatpush1.bf16.msra.mxu0 %v522
    %556 = vmatprep.subr.bf16.mxu0 %v525
    %557 = vmatpush1.bf16.msra.mxu0 %v524
    %558 = vmatprep.subr.bf16.mxu0 %v527
    %559 = vmatpush1.bf16.msra.mxu0 %v526
    %560 = vmatprep.subr.bf16.mxu0 %v529
    %561 = vmatpush1.bf16.msra.mxu0 %v528
    %562 = vmatprep.subr.bf16.mxu0 %v531
    %563 = vmatpush1.bf16.msra.mxu0 %v530
    %564 = vmatprep.subr.bf16.mxu0 %v533
    %565 = vmatpush1.bf16.msra.mxu0 %v532
    %566 = vmatprep.subr.bf16.mxu0 %v535
    %567 = vmatpush1.bf16.msra.mxu0 %v534
    %568 = vmatprep.subr.bf16.mxu0 %v537
    %569 = vmatpush1.bf16.msra.mxu0 %v536
    %570 = vmatprep.subr.bf16.mxu0 0
    %571 = vmatpush1.bf16.msra.mxu0 0
    %572 = vmatprep.subr.bf16.mxu0 0
    %573 = vmatpush1.bf16.msra.mxu0 0
    %574 = vmatprep.subr.bf16.mxu0 0
    %575 = vmatpush1.bf16.msra.mxu0 0
    %576 = vmatprep.subr.bf16.mxu0 0
    %577 = vmatpush1.bf16.msra.mxu0 0
    %578 = vmatprep.subr.bf16.mxu0 0
    %579 = vmatpush1.bf16.msra.mxu0 0
    %580 = vmatprep.subr.bf16.mxu0 0
    %581 = vmatpush1.bf16.msra.mxu0 0
    %582 = vmatprep.subr.bf16.mxu0 0
    %583 = vmatpush1.bf16.msra.mxu0 0
    %584 = vmatprep.subr.bf16.mxu0 0
    %585 = vmatpush1.bf16.msra.mxu0 0
    %586 = vmatprep.mubr.bf16.mxu0 0
    %587 = vmatmul.mubr.bf16.gmra.mrb[0].mxu0 %v445
    %v588 = vpop.f32.mrb[0].mxu0
    %v589 = vadd.f32 %v467, %v588
    %v590 = vpop.f32.mrb[0].mxu0
    %v591 = vadd.f32 %v471, %v590
    %v592 = vpop.f32.mrb[0].mxu0
    %v593 = vadd.f32 %v467, %v592
    %v594 = vpop.f32.mrb[0].mxu0
    %v595 = vadd.f32 %v471, %v594
    %596 = vdwg.mxu0
    %v597 = vmax.f32 %v589, 0.0
    %v598 = vmax.f32 %v591, 0.0
    %v599 = vmax.f32 %v593, 0.0
    %v600 = vmax.f32 %v595, 0.0
    %v601 = vpack.c.bf16 %v599, %v597
    %v602 = vpack.c.bf16 %v600, %v598
    %v603 = vld [vmem:[#allocation10] sm:$0xf]
    %v604 = vld [vmem:[#allocation10 + $0x4] sm:$0xf]
    %v605 = vld [vmem:[#allocation10 + $0x8] sm:$0xf]
    %v606 = vld [vmem:[#allocation10 + $0xc] sm:$0xf]
    %v607 = vld [vmem:[#allocation10 + $0x10] sm:$0xf]
    %v608 = vld [vmem:[#allocation10 + $0x14] sm:$0xf]
    %v609 = vld [vmem:[#allocation10 + $0x18] sm:$0xf]
    %v610 = vld [vmem:[#allocation10 + $0x1c] sm:$0xf]
    %v611 = vld [vmem:[#allocation10 + $0x20] sm:$0xf]
    %v612 = vld [vmem:[#allocation10 + $0x24] sm:$0xf]
    %v613 = vld [vmem:[#allocation10 + $0x28] sm:$0xf]
    %v614 = vld [vmem:[#allocation10 + $0x2c] sm:$0xf]
    %v615 = vld [vmem:[#allocation10 + $0x30] sm:$0xf]
    %v616 = vld [vmem:[#allocation10 + $0x34] sm:$0xf]
    %v617 = vld [vmem:[#allocation10 + $0x38] sm:$0xf]
    %v618 = vld [vmem:[#allocation10 + $0x3c] sm:$0xf]
    %v619 = vld [vmem:[#allocation10 + $0x40] sm:$0xf]
    %v620 = vld [vmem:[#allocation10 + $0x44] sm:$0xf]
    %v621 = vld [vmem:[#allocation10 + $0x48] sm:$0xf]
    %v622 = vld [vmem:[#allocation10 + $0x4c] sm:$0xf]
    %v623 = vld [vmem:[#allocation10 + $0x50] sm:$0xf]
    %v624 = vld [vmem:[#allocation10 + $0x54] sm:$0xf]
    %v625 = vld [vmem:[#allocation10 + $0x58] sm:$0xf]
    %v626 = vld [vmem:[#allocation10 + $0x5c] sm:$0xf]
    %v627 = vld [vmem:[#allocation10 + $0x60] sm:$0xf]
    %v628 = vld [vmem:[#allocation10 + $0x64] sm:$0xf]
    %v629 = vld [vmem:[#allocation10 + $0x68] sm:$0xf]
    %v630 = vld [vmem:[#allocation10 + $0x6c] sm:$0xf]
    %v631 = vld [vmem:[#allocation10 + $0x70] sm:$0xf]
    %v632 = vld [vmem:[#allocation10 + $0x74] sm:$0xf]
    %v633 = vld [vmem:[#allocation10 + $0x78] sm:$0xf]
    %v634 = vld [vmem:[#allocation10 + $0x7c] sm:$0xf]
    %v635 = vld [vmem:[%s8] sm:$0x1]
    %v637 = vlaneseq
    %v638 = vshrl.u32 %v637, 7
    %v639 = vsub.s32 0, %v638
    %v640 = vrot.slane %v635, %v639
    %v674 = vunpack.c.l.b16 %v603
    %v675 = vunpack.c.l.b16 %v604
    %v676 = vunpack.c.l.b16 %v605
    %v677 = vunpack.c.l.b16 %v606
    %v678 = vunpack.c.l.b16 %v607
    %v679 = vunpack.c.l.b16 %v608
    %v680 = vunpack.c.l.b16 %v609
    %v681 = vunpack.c.l.b16 %v610
    %v682 = vunpack.c.l.b16 %v611
    %v683 = vunpack.c.l.b16 %v612
    %v684 = vunpack.c.l.b16 %v613
    %v685 = vunpack.c.l.b16 %v614
    %v686 = vunpack.c.l.b16 %v615
    %v687 = vunpack.c.l.b16 %v616
    %v688 = vunpack.c.l.b16 %v617
    %v689 = vunpack.c.l.b16 %v618
    %v690 = vunpack.c.l.b16 %v619
    %v691 = vunpack.c.l.b16 %v620
    %v692 = vunpack.c.l.b16 %v621
    %v693 = vunpack.c.l.b16 %v622
    %v694 = vunpack.c.l.b16 %v623
    %v695 = vunpack.c.l.b16 %v624
    %v696 = vunpack.c.l.b16 %v625
    %v697 = vunpack.c.l.b16 %v626
    %v698 = vunpack.c.l.b16 %v627
    %v699 = vunpack.c.l.b16 %v628
    %v700 = vunpack.c.l.b16 %v629
    %v701 = vunpack.c.l.b16 %v630
    %v702 = vunpack.c.l.b16 %v631
    %v703 = vunpack.c.l.b16 %v632
    %v704 = vunpack.c.l.b16 %v633
    %v705 = vunpack.c.l.b16 %v634
    %v706 = vpack.c.b16 %v675, %v674
    %v707 = vpack.c.b16 %v677, %v676
    %v708 = vpack.c.b16 %v679, %v678
    %v709 = vpack.c.b16 %v681, %v680
    %v710 = vpack.c.b16 %v683, %v682
    %v711 = vpack.c.b16 %v685, %v684
    %v712 = vpack.c.b16 %v687, %v686
    %v713 = vpack.c.b16 %v689, %v688
    %v714 = vpack.c.b16 %v691, %v690
    %v715 = vpack.c.b16 %v693, %v692
    %v716 = vpack.c.b16 %v695, %v694
    %v717 = vpack.c.b16 %v697, %v696
    %v718 = vpack.c.b16 %v699, %v698
    %v719 = vpack.c.b16 %v701, %v700
    %v720 = vpack.c.b16 %v703, %v702
    %v721 = vpack.c.b16 %v705, %v704
    %738 = vmatprep.subr.bf16.mxu0 0
    %739 = vmatpush1.bf16.msra.mxu0 %v706
    %740 = vmatprep.subr.bf16.mxu0 0
    %741 = vmatpush1.bf16.msra.mxu0 %v707
    %742 = vmatprep.subr.bf16.mxu0 0
    %743 = vmatpush1.bf16.msra.mxu0 %v708
    %744 = vmatprep.subr.bf16.mxu0 0
    %745 = vmatpush1.bf16.msra.mxu0 %v709
    %746 = vmatprep.subr.bf16.mxu0 0
    %747 = vmatpush1.bf16.msra.mxu0 %v710
    %748 = vmatprep.subr.bf16.mxu0 0
    %749 = vmatpush1.bf16.msra.mxu0 %v711
    %750 = vmatprep.subr.bf16.mxu0 0
    %751 = vmatpush1.bf16.msra.mxu0 %v712
    %752 = vmatprep.subr.bf16.mxu0 0
    %753 = vmatpush1.bf16.msra.mxu0 %v713
    %754 = vmatprep.subr.bf16.mxu0 0
    %755 = vmatpush1.bf16.msra.mxu0 %v714
    %756 = vmatprep.subr.bf16.mxu0 0
    %757 = vmatpush1.bf16.msra.mxu0 %v715
    %758 = vmatprep.subr.bf16.mxu0 0
    %759 = vmatpush1.bf16.msra.mxu0 %v716
    %760 = vmatprep.subr.bf16.mxu0 0
    %761 = vmatpush1.bf16.msra.mxu0 %v717
    %762 = vmatprep.subr.bf16.mxu0 0
    %763 = vmatpush1.bf16.msra.mxu0 %v718
    %764 = vmatprep.subr.bf16.mxu0 0
    %765 = vmatpush1.bf16.msra.mxu0 %v719
    %766 = vmatprep.subr.bf16.mxu0 0
    %767 = vmatpush1.bf16.msra.mxu0 %v720
    %768 = vmatprep.subr.bf16.mxu0 0
    %769 = vmatpush1.bf16.msra.mxu0 %v721
    %770 = vmatprep.mubr.bf16.mxu0 %v602
    %771 = vmatmul.mubr.bf16.gmra.mrb[0].mxu0 %v601
    %v772 = vpop.f32.mrb[0].mxu0
    %v773 = vadd.f32 %v640, %v772
    %v774 = vpop.f32.mrb[0].mxu0
    %v775 = vpop.f32.mrb[0].mxu0
    %v776 = vadd.f32 %v640, %v775
    %v777 = vpop.f32.mrb[0].mxu0
    %778 = vdwg.mxu0
    %v779 = vmax.f32 %v773, 0.0
    %v780 = vmax.f32 %v776, 0.0
    %781 = vst [vmem:[#allocation11] sm:$0xff] %v779
    %782 = vst [vmem:[#allocation11 + $0x8] sm:$0xff] %v780
    // Predicated region
    $region58: #{tpu_custom_call.1} parent=1 // pred_check
      _
    $region59: #{tpu_custom_call.1} parent=1 // pred_check_branch
      %784 = sbr.rel (0) target = $region61
    $region60: #{tpu_custom_call.1} parent=1 // pred_region
      %s786 = ssub.s32 256, 256
      %787 = vsyncadd [#allocation4], %s786
      %s788 = sshll.u32 [#allocation11], 4
      %s789 = int_to_ptr.vmem [resolvable:$true] %s788
      %794 = dma.vmem_to_hbm [thread:$0]  %s789, 256, %s9, [#allocation4], 128, 128, 8
    $region61: #{tpu_custom_call.1} parent=1 // pred_fallthru
      _
    // Predicated region
    $region62: #{tpu_custom_call.1} parent=1 // pred_check
      _
    $region63: #{tpu_custom_call.1} parent=1 // pred_check_branch
      %796 = sbr.rel (0) target = $region65
    $region64: #{tpu_custom_call.1} parent=1 // pred_region
      %797 = dma.done [#allocation4], 256
    $region65: #{tpu_custom_call.1} parent=1 // pred_fallthru
      _
    %798 = vsyncpa [#allocation3], 1
    %799 = vsyncpa [#allocation6], 1
    %800 = vsyncpa [#allocation9], 1
    %801 = vsyncpa [#allocation4], 1

</llo_original>
